<compile_context>
chip_gen: v7x
topology: tpu7x:2x2x1
jax: 0.10.0
libtpu: 0.0.40
codegen_flags: <defaults>
</compile_context>

<pallas_src>
import jax
import jax.numpy as jnp
from jax import lax
from jax.experimental import pallas as pl
from jax.experimental.pallas import tpu as pltpu

EPS = 1e-5
K = 5                      # conv kernel size (both convs)
LANE = 128
TBC = 16                   # phase-1 batch chunk (= bf16 sublane tile -> free reshapes)
MAX_TB = 256               # batch rows per grid step (cap; multiple of TBC)
MXU_DTYPE = jnp.bfloat16   # MXU input dtype; weights pre-cast in the wrapper


def _rup(n, m):
    return ((n + m - 1) // m) * m


def _fold_bn(gamma, beta, mean, var):
    scale = gamma / jnp.sqrt(var + EPS)
    return scale, beta - mean * scale


def _make_kernel(*, L2, L3, TB, CinP, C1p, C2p):
    nc = TB // TBC
    KW = K * CinP
    inv_l3 = 1.0 / float(L3)

    def kernel(x_ref, w1_ref, b1_ref, w2_ref, b2_ref,
               wl1_ref, bl1_ref, wl2_ref, bl2_ref, o_ref, y_s):
        # ---------------- phase 1: conv1 + BN1 + ReLU + MaxPool(2,2) -----------------
        # Chunked over batch (TBC=16 rows) so im2col / conv1 intermediates stay in
        # registers; pooled result is staged in the bf16 VMEM scratch y_s.
        w1 = w1_ref[...]                                   # (K*CinP, C1p) bf16 (hoisted)
        b1 = b1_ref[...]                                   # (1, C1p) f32
        for c in range(nc):                                # static, unrolled
            s = c * TBC
            xc = x_ref[:, s:s + TBC, :]                    # (L_pad, TBC, CinP) bf16
            xq = xc.reshape(-1, 4, TBC, CinP)              # input row 4m+r -> xq[m, r]
            # conv1 even output position 2m reads input rows 4m + j, j = 0..4
            pe = jnp.concatenate(
                [xq[:L2, 0], xq[:L2, 1], xq[:L2, 2], xq[:L2, 3], xq[1:L2 + 1, 0]],
                axis=-1)                                   # (L2, TBC, K*CinP)
            # conv1 odd output position 2m+1 reads input rows 4m + 2 + j
            po = jnp.concatenate(
                [xq[:L2, 2], xq[:L2, 3], xq[1:L2 + 1, 0], xq[1:L2 + 1, 1],
                 xq[1:L2 + 1, 2]],
                axis=-1)                                   # (L2, TBC, K*CinP)
            p1 = jnp.concatenate([pe.reshape(L2 * TBC, KW),
                                  po.reshape(L2 * TBC, KW)], axis=0)   # (2*L2*TBC, KW)
            y1 = jnp.dot(p1, w1, preferred_element_type=jnp.float32) + b1
            y1 = jnp.maximum(y1, 0.0)                      # conv1 + folded BN1 + ReLU
            pooled = jnp.maximum(y1[:L2 * TBC], y1[L2 * TBC:])   # fused MaxPool1d(2,2)
            y_s[:, s:s + TBC, :] = pooled.reshape(L2, TBC, C1p).astype(y_s.dtype)

        # --------- phase 2: conv2 + BN2 + ReLU + AvgPool + Linear1 + BN3 + ReLU + Linear2
        b2 = b2_ref[...]                                   # (1, C2p) f32
        pool_acc = jnp.zeros((TB, C2p), jnp.float32)
        for u in range(L3):                                # conv2 output positions
            acc = jnp.zeros((TB, C2p), jnp.float32)
            for j in range(K):                             # tap accumulation, M = TB
                acc = acc + jnp.dot(y_s[2 * u + j], w2_ref[j],
                                    preferred_element_type=jnp.float32)
            pool_acc = pool_acc + jnp.maximum(acc + b2, 0.0)    # ReLU, running sum
        pooled2 = pool_acc * inv_l3                        # AdaptiveAvgPool1d(1), (TB, C2p)

        h = jnp.dot(pooled2.astype(MXU_DTYPE), wl1_ref[...],
                    preferred_element_type=jnp.float32) + bl1_ref[...]
        h = jnp.maximum(h, 0.0)                            # Linear1 + folded BN3 + ReLU
        out = jnp.dot(h.astype(MXU_DTYPE), wl2_ref[...],
                      preferred_element_type=jnp.float32) + bl2_ref[...]
        o_ref[...] = out.astype(o_ref.dtype)               # (TB, Coutp) lane-dense store

    return kernel


def conv_backend_forward(x, p):
    B, L, Cin = x.shape
    C1, C2 = 2 * Cin, 4 * Cin
    Cout = p["Wl2"].shape[0]

    L1 = (L - K) // 2 + 1          # Conv1d(k=5, s=2) output length
    L2 = L1 // 2                   # after MaxPool1d(2, 2)
    assert L2 >= K, f"sequence too short: need L >= 23, got L={L}"
    L3 = (L2 - K) // 2 + 1         # conv2 output length (>= 1 by the assert)
    L_pad = 4 * (L2 + 1)           # conv1 only reads input rows 0 .. 4*L2+2

    CinP = _rup(Cin, 8)            # >= 8-wide lane slabs for the im2col concat
    C1p, C2p = _rup(C1, LANE), _rup(C2, LANE)
    Hp, Coutp = _rup(Cin, LANE), _rup(Cout, LANE)

    TB = min(MAX_TB, _rup(B, TBC))           # batch rows per grid step
    B_pad = _rup(B, TB)
    f32, mx = jnp.float32, MXU_DTYPE

    # ---- input: (B, L, Cin) -> (L_pad, B_pad, CinP) bf16, batch on sublanes --------
    Lc = min(L, L_pad)
    x_t = jnp.zeros((L_pad, B_pad, CinP), mx)
    x_t = x_t.at[:Lc, :B, :Cin].set(jnp.transpose(x[:, :Lc, :], (1, 0, 2)).astype(mx))

    # ---- fold BN into weights/biases, zero-pad channels, pre-cast weights to bf16 --
    sc1, sh1 = _fold_bn(p["g1"], p["b1"], p["m1"], p["v1"])
    W1 = jnp.zeros((K, CinP, C1p), f32).at[:, :Cin, :C1].set(
        jnp.transpose(p["w1"], (2, 1, 0)) * sc1[None, None, :])
    W1 = W1.reshape(K * CinP, C1p).astype(mx)
    B1 = jnp.zeros((1, C1p), f32).at[0, :C1].set(sh1)

    sc2, sh2 = _fold_bn(p["g2"], p["b2"], p["m2"], p["v2"])
    W2 = jnp.zeros((K, C1p, C2p), f32).at[:, :C1, :C2].set(
        jnp.transpose(p["w2"], (2, 1, 0)) * sc2[None, None, :]).astype(mx)
    B2 = jnp.zeros((1, C2p), f32).at[0, :C2].set(sh2)

    sc3, sh3 = _fold_bn(p["g3"], p["b3"], p["m3"], p["v3"])
    WL1 = jnp.zeros((C2p, Hp), f32).at[:C2, :Cin].set(
        p["Wl1"].T * sc3[None, :]).astype(mx)
    BL1 = jnp.zeros((1, Hp), f32).at[0, :Cin].set(p["bl1"] * sc3 + sh3)

    WL2 = jnp.zeros((Hp, Coutp), f32).at[:Cin, :Cout].set(p["Wl2"].T).astype(mx)
    BL2 = jnp.zeros((1, Coutp), f32).at[0, :Cout].set(p["bl2"])

    def const(shape):
        return pl.BlockSpec(shape, lambda i: (0,) * len(shape))   # VMEM-resident weights

    kernel = _make_kernel(L2=L2, L3=L3, TB=TB, CinP=CinP, C1p=C1p, C2p=C2p)

    out = pl.pallas_call(
        kernel,
        out_shape=jax.ShapeDtypeStruct((B_pad, Coutp), f32),
        grid=(B_pad // TB,),
        in_specs=[
            pl.BlockSpec((L_pad, TB, CinP), lambda i: (0, i, 0)),  # x: TB batch rows/step
            const((K * CinP, C1p)), const((1, C1p)),               # conv1 (BN1 folded)
            const((K, C1p, C2p)), const((1, C2p)),                 # conv2 taps (BN2 folded)
            const((C2p, Hp)), const((1, Hp)),                      # linear1 (BN3 folded)
            const((Hp, Coutp)), const((1, Coutp)),                 # linear2
        ],
        out_specs=pl.BlockSpec((TB, Coutp), lambda i: (i, 0)),
        scratch_shapes=[pltpu.VMEM((L2, TB, C1p), MXU_DTYPE)],     # pooled conv1 output
        compiler_params=pltpu.CompilerParams(
            dimension_semantics=("parallel",),
            vmem_limit_bytes=32 * 1024 * 1024),
    )(x_t, W1, B1, W2, B2, WL1, BL1, WL2, BL2)

    return out[:B, :Cout]


def conv_backend_reference(x, p):
    # pure-JAX f32 reference mirroring the PyTorch forward (eval-mode BatchNorm)
    xn = jnp.transpose(x, (0, 2, 1))                               # (B, C, L)

    def bn_ncw(y, g, b, m, v):
        return ((y - m[None, :, None]) / jnp.sqrt(v[None, :, None] + EPS)
                * g[None, :, None] + b[None, :, None])

    y = lax.conv_general_dilated(xn, p["w1"], (2,), "VALID",
                                 dimension_numbers=("NCH", "OIH", "NCH"))
    y = jnp.maximum(bn_ncw(y, p["g1"], p["b1"], p["m1"], p["v1"]), 0.0)
    L1 = y.shape[-1]
    y = y[..., :(L1 // 2) * 2].reshape(y.shape[0], y.shape[1], L1 // 2, 2).max(-1)
    y = lax.conv_general_dilated(y, p["w2"], (2,), "VALID",
                                 dimension_numbers=("NCH", "OIH", "NCH"))
    y = jnp.maximum(bn_ncw(y, p["g2"], p["b2"], p["m2"], p["v2"]), 0.0)
    y = y.mean(-1)                                                  # AdaptiveAvgPool1d(1)+Flatten
    y = y @ p["Wl1"].T + p["bl1"]
    y = (y - p["m3"]) / jnp.sqrt(p["v3"] + EPS) * p["g3"] + p["b3"]
    y = jnp.maximum(y, 0.0)
    y = y @ p["Wl2"].T + p["bl2"]
    return y


if __name__ == "__main__":
    Cin, Cout = 4, 8          # input_channels, output_channels
    B, L = 2, 32              # batch, sequence length (x is (B, L, Cin))
    C1, C2 = 2 * Cin, 4 * Cin
    f32 = jnp.float32

    key = jax.random.PRNGKey(0)
    ks = jax.random.split(key, 19)
    params = {
        "w1": 0.1 * jax.random.normal(ks[0], (C1, Cin, 5), f32),
        "g1": 1.0 + 0.1 * jax.random.normal(ks[1], (C1,), f32),
        "b1": 0.1 * jax.random.normal(ks[2], (C1,), f32),
        "m1": 0.1 * jax.random.normal(ks[3], (C1,), f32),
        "v1": jax.random.uniform(ks[4], (C1,), f32, 0.5, 1.5),
        "w2": 0.1 * jax.random.normal(ks[5], (C2, C1, 5), f32),
        "g2": 1.0 + 0.1 * jax.random.normal(ks[6], (C2,), f32),
        "b2": 0.1 * jax.random.normal(ks[7], (C2,), f32),
        "m2": 0.1 * jax.random.normal(ks[8], (C2,), f32),
        "v2": jax.random.uniform(ks[9], (C2,), f32, 0.5, 1.5),
        "Wl1": 0.1 * jax.random.normal(ks[10], (Cin, C2), f32),
        "bl1": 0.1 * jax.random.normal(ks[11], (Cin,), f32),
        "g3": 1.0 + 0.1 * jax.random.normal(ks[12], (Cin,), f32),
        "b3": 0.1 * jax.random.normal(ks[13], (Cin,), f32),
        "m3": 0.1 * jax.random.normal(ks[14], (Cin,), f32),
        "v3": jax.random.uniform(ks[15], (Cin,), f32, 0.5, 1.5),
        "Wl2": 0.1 * jax.random.normal(ks[16], (Cout, Cin), f32),
        "bl2": 0.1 * jax.random.normal(ks[17], (Cout,), f32),
    }
    x = jax.random.normal(ks[18], (B, L, Cin), f32)

    out = jax.jit(conv_backend_forward)(x, params)
    out = jax.block_until_ready(out)
    ref = conv_backend_reference(x, params)

    assert out.shape == (B, Cout), out.shape
    # bf16 MXU inputs (per perf review) -> loosened tolerance; f32 reference.
    assert jnp.allclose(out, ref, rtol=2e-2, atol=2e-2), (out, ref)
    print("KERNEL_OK")
</pallas_src>

<mosaic_0001>
module attributes {stable_mosaic.version = 11 : i64} {
  func.func @kernel(%arg0: i32, %arg1: memref<32x16x8xbf16, #tpu.memory_space<vmem>>, %arg2: memref<40x128xbf16, #tpu.memory_space<vmem>>, %arg3: memref<1x128xf32, #tpu.memory_space<vmem>>, %arg4: memref<5x128x128xbf16, #tpu.memory_space<vmem>>, %arg5: memref<1x128xf32, #tpu.memory_space<vmem>>, %arg6: memref<128x128xbf16, #tpu.memory_space<vmem>>, %arg7: memref<1x128xf32, #tpu.memory_space<vmem>>, %arg8: memref<128x128xbf16, #tpu.memory_space<vmem>>, %arg9: memref<1x128xf32, #tpu.memory_space<vmem>>, %arg10: memref<16x128xf32, #tpu.memory_space<vmem>>, %arg11: memref<7x16x128xbf16, #tpu.memory_space<vmem>>) attributes {dimension_semantics = [#tpu.dimension_semantics<parallel>], iteration_bounds = array<i64: 1>, scalar_prefetch = 0 : i64, scratch_operands = 1 : i64, tpu.core_type = #tpu.core_type<tc>, window_params = [{transform_indices = @transform_0, window_bounds = array<i64: 32, 16, 8>}, {pipeline_mode = #tpu.pipeline_mode<synchronous>, transform_indices = @transform_1, window_bounds = array<i64: 40, 128>}, {pipeline_mode = #tpu.pipeline_mode<synchronous>, transform_indices = @transform_2, window_bounds = array<i64: 1, 128>}, {pipeline_mode = #tpu.pipeline_mode<synchronous>, transform_indices = @transform_3, window_bounds = array<i64: 5, 128, 128>}, {pipeline_mode = #tpu.pipeline_mode<synchronous>, transform_indices = @transform_4, window_bounds = array<i64: 1, 128>}, {pipeline_mode = #tpu.pipeline_mode<synchronous>, transform_indices = @transform_5, window_bounds = array<i64: 128, 128>}, {pipeline_mode = #tpu.pipeline_mode<synchronous>, transform_indices = @transform_6, window_bounds = array<i64: 1, 128>}, {pipeline_mode = #tpu.pipeline_mode<synchronous>, transform_indices = @transform_7, window_bounds = array<i64: 128, 128>}, {pipeline_mode = #tpu.pipeline_mode<synchronous>, transform_indices = @transform_8, window_bounds = array<i64: 1, 128>}, {transform_indices = @transform_9, window_bounds = array<i64: 16, 128>}]} {
    %c0 = arith.constant 0 : index
    %c0_0 = arith.constant 0 : index
    %0 = vector.load %arg2[%c0, %c0_0] : memref<40x128xbf16, #tpu.memory_space<vmem>>, vector<40x128xbf16>
    %c0_1 = arith.constant 0 : index
    %c0_2 = arith.constant 0 : index
    %1 = vector.load %arg3[%c0_1, %c0_2] : memref<1x128xf32, #tpu.memory_space<vmem>>, vector<1x128xf32>
    %c0_3 = arith.constant 0 : index
    %c0_4 = arith.constant 0 : index
    %c0_5 = arith.constant 0 : index
    %2 = vector.load %arg1[%c0_3, %c0_4, %c0_5] : memref<32x16x8xbf16, #tpu.memory_space<vmem>>, vector<32x16x8xbf16>
    %3 = vector.shape_cast %2 : vector<32x16x8xbf16> to vector<8x4x16x8xbf16>
    %4 = vector.extract_strided_slice %3 {offsets = [0, 0, 0, 0], sizes = [7, 1, 16, 8], strides = [1, 1, 1, 1]} : vector<8x4x16x8xbf16> to vector<7x1x16x8xbf16>
    %5 = vector.shape_cast %4 : vector<7x1x16x8xbf16> to vector<7x16x8xbf16>
    %6 = vector.extract_strided_slice %3 {offsets = [0, 1, 0, 0], sizes = [7, 1, 16, 8], strides = [1, 1, 1, 1]} : vector<8x4x16x8xbf16> to vector<7x1x16x8xbf16>
    %7 = vector.shape_cast %6 : vector<7x1x16x8xbf16> to vector<7x16x8xbf16>
    %8 = vector.extract_strided_slice %3 {offsets = [0, 2, 0, 0], sizes = [7, 1, 16, 8], strides = [1, 1, 1, 1]} : vector<8x4x16x8xbf16> to vector<7x1x16x8xbf16>
    %9 = vector.shape_cast %8 : vector<7x1x16x8xbf16> to vector<7x16x8xbf16>
    %10 = vector.extract_strided_slice %3 {offsets = [0, 3, 0, 0], sizes = [7, 1, 16, 8], strides = [1, 1, 1, 1]} : vector<8x4x16x8xbf16> to vector<7x1x16x8xbf16>
    %11 = vector.shape_cast %10 : vector<7x1x16x8xbf16> to vector<7x16x8xbf16>
    %12 = vector.extract_strided_slice %3 {offsets = [1, 0, 0, 0], sizes = [7, 1, 16, 8], strides = [1, 1, 1, 1]} : vector<8x4x16x8xbf16> to vector<7x1x16x8xbf16>
    %13 = vector.shape_cast %12 : vector<7x1x16x8xbf16> to vector<7x16x8xbf16>
    %14 = tpu.concatenate %5, %7, %9, %11, %13 in 2 : vector<7x16x8xbf16>, vector<7x16x8xbf16>, vector<7x16x8xbf16>, vector<7x16x8xbf16>, vector<7x16x8xbf16> -> vector<7x16x40xbf16>
    %15 = vector.extract_strided_slice %3 {offsets = [0, 2, 0, 0], sizes = [7, 1, 16, 8], strides = [1, 1, 1, 1]} : vector<8x4x16x8xbf16> to vector<7x1x16x8xbf16>
    %16 = vector.shape_cast %15 : vector<7x1x16x8xbf16> to vector<7x16x8xbf16>
    %17 = vector.extract_strided_slice %3 {offsets = [0, 3, 0, 0], sizes = [7, 1, 16, 8], strides = [1, 1, 1, 1]} : vector<8x4x16x8xbf16> to vector<7x1x16x8xbf16>
    %18 = vector.shape_cast %17 : vector<7x1x16x8xbf16> to vector<7x16x8xbf16>
    %19 = vector.extract_strided_slice %3 {offsets = [1, 0, 0, 0], sizes = [7, 1, 16, 8], strides = [1, 1, 1, 1]} : vector<8x4x16x8xbf16> to vector<7x1x16x8xbf16>
    %20 = vector.shape_cast %19 : vector<7x1x16x8xbf16> to vector<7x16x8xbf16>
    %21 = vector.extract_strided_slice %3 {offsets = [1, 1, 0, 0], sizes = [7, 1, 16, 8], strides = [1, 1, 1, 1]} : vector<8x4x16x8xbf16> to vector<7x1x16x8xbf16>
    %22 = vector.shape_cast %21 : vector<7x1x16x8xbf16> to vector<7x16x8xbf16>
    %23 = vector.extract_strided_slice %3 {offsets = [1, 2, 0, 0], sizes = [7, 1, 16, 8], strides = [1, 1, 1, 1]} : vector<8x4x16x8xbf16> to vector<7x1x16x8xbf16>
    %24 = vector.shape_cast %23 : vector<7x1x16x8xbf16> to vector<7x16x8xbf16>
    %25 = tpu.concatenate %16, %18, %20, %22, %24 in 2 : vector<7x16x8xbf16>, vector<7x16x8xbf16>, vector<7x16x8xbf16>, vector<7x16x8xbf16>, vector<7x16x8xbf16> -> vector<7x16x40xbf16>
    %26 = vector.shape_cast %14 : vector<7x16x40xbf16> to vector<112x40xbf16>
    %27 = vector.shape_cast %25 : vector<7x16x40xbf16> to vector<112x40xbf16>
    %28 = tpu.concatenate %26, %27 in 0 : vector<112x40xbf16>, vector<112x40xbf16> -> vector<224x40xbf16>
    %cst = arith.constant dense<0.000000e+00> : vector<224x128xf32>
    %29 = tpu.matmul %28, %0, %cst {dimension_numbers = #tpu.dot_dimension_numbers<[1], [0], [0], [1], [0, 0, 1, 1], [], []>} : vector<224x40xbf16>, vector<40x128xbf16>, vector<224x128xf32> -> vector<224x128xf32>
    %30 = vector.broadcast %1 : vector<1x128xf32> to vector<224x128xf32>
    %31 = arith.addf %29, %30 : vector<224x128xf32>
    %cst_6 = arith.constant 0.000000e+00 : f32
    %32 = vector.broadcast %cst_6 : f32 to vector<224x128xf32>
    %33 = arith.maximumf %31, %32 : vector<224x128xf32>
    %34 = vector.extract_strided_slice %33 {offsets = [0, 0], sizes = [112, 128], strides = [1, 1]} : vector<224x128xf32> to vector<112x128xf32>
    %35 = vector.extract_strided_slice %33 {offsets = [112, 0], sizes = [112, 128], strides = [1, 1]} : vector<224x128xf32> to vector<112x128xf32>
    %36 = arith.maximumf %34, %35 : vector<112x128xf32>
    %37 = vector.shape_cast %36 : vector<112x128xf32> to vector<7x16x128xf32>
    %38 = arith.truncf %37 : vector<7x16x128xf32> to vector<7x16x128xbf16>
    %c0_7 = arith.constant 0 : index
    %c0_8 = arith.constant 0 : index
    %c0_9 = arith.constant 0 : index
    %39 = vector.load %arg11[%c0_7, %c0_8, %c0_9] : memref<7x16x128xbf16, #tpu.memory_space<vmem>>, vector<7x16x128xbf16>
    tpu.vector_store %arg11[%c0_7, %c0_8, %c0_9], %38 {strides = array<i32>} : memref<7x16x128xbf16, #tpu.memory_space<vmem>>, vector<7x16x128xbf16>,
    %c0_10 = arith.constant 0 : index
    %c0_11 = arith.constant 0 : index
    %40 = vector.load %arg5[%c0_10, %c0_11] : memref<1x128xf32, #tpu.memory_space<vmem>>, vector<1x128xf32>
    %cst_12 = arith.constant 0.000000e+00 : f32
    %41 = vector.broadcast %cst_12 : f32 to vector<16x128xf32>
    %cst_13 = arith.constant 0.000000e+00 : f32
    %42 = vector.broadcast %cst_13 : f32 to vector<16x128xf32>
    %c0_14 = arith.constant 0 : index
    %c0_15 = arith.constant 0 : index
    %c0_16 = arith.constant 0 : index
    %43 = vector.load %arg11[%c0_14, %c0_15, %c0_16] : memref<7x16x128xbf16, #tpu.memory_space<vmem>>, vector<1x16x128xbf16>
    %44 = vector.shape_cast %43 : vector<1x16x128xbf16> to vector<16x128xbf16>
    %c0_17 = arith.constant 0 : index
    %c0_18 = arith.constant 0 : index
    %c0_19 = arith.constant 0 : index
    %45 = vector.load %arg4[%c0_17, %c0_18, %c0_19] : memref<5x128x128xbf16, #tpu.memory_space<vmem>>, vector<1x128x128xbf16>
    %46 = vector.shape_cast %45 : vector<1x128x128xbf16> to vector<128x128xbf16>
    %cst_20 = arith.constant dense<0.000000e+00> : vector<16x128xf32>
    %47 = tpu.matmul %44, %46, %cst_20 {dimension_numbers = #tpu.dot_dimension_numbers<[1], [0], [0], [1], [0, 0, 1, 1], [], []>} : vector<16x128xbf16>, vector<128x128xbf16>, vector<16x128xf32> -> vector<16x128xf32>
    %48 = arith.addf %42, %47 : vector<16x128xf32>
    %c1 = arith.constant 1 : index
    %c0_21 = arith.constant 0 : index
    %c0_22 = arith.constant 0 : index
    %49 = vector.load %arg11[%c1, %c0_21, %c0_22] : memref<7x16x128xbf16, #tpu.memory_space<vmem>>, vector<1x16x128xbf16>
    %50 = vector.shape_cast %49 : vector<1x16x128xbf16> to vector<16x128xbf16>
    %c1_23 = arith.constant 1 : index
    %c0_24 = arith.constant 0 : index
    %c0_25 = arith.constant 0 : index
    %51 = vector.load %arg4[%c1_23, %c0_24, %c0_25] : memref<5x128x128xbf16, #tpu.memory_space<vmem>>, vector<1x128x128xbf16>
    %52 = vector.shape_cast %51 : vector<1x128x128xbf16> to vector<128x128xbf16>
    %cst_26 = arith.constant dense<0.000000e+00> : vector<16x128xf32>
    %53 = tpu.matmul %50, %52, %cst_26 {dimension_numbers = #tpu.dot_dimension_numbers<[1], [0], [0], [1], [0, 0, 1, 1], [], []>} : vector<16x128xbf16>, vector<128x128xbf16>, vector<16x128xf32> -> vector<16x128xf32>
    %54 = arith.addf %48, %53 : vector<16x128xf32>
    %c2 = arith.constant 2 : index
    %c0_27 = arith.constant 0 : index
    %c0_28 = arith.constant 0 : index
    %55 = vector.load %arg11[%c2, %c0_27, %c0_28] : memref<7x16x128xbf16, #tpu.memory_space<vmem>>, vector<1x16x128xbf16>
    %56 = vector.shape_cast %55 : vector<1x16x128xbf16> to vector<16x128xbf16>
    %c2_29 = arith.constant 2 : index
    %c0_30 = arith.constant 0 : index
    %c0_31 = arith.constant 0 : index
    %57 = vector.load %arg4[%c2_29, %c0_30, %c0_31] : memref<5x128x128xbf16, #tpu.memory_space<vmem>>, vector<1x128x128xbf16>
    %58 = vector.shape_cast %57 : vector<1x128x128xbf16> to vector<128x128xbf16>
    %cst_32 = arith.constant dense<0.000000e+00> : vector<16x128xf32>
    %59 = tpu.matmul %56, %58, %cst_32 {dimension_numbers = #tpu.dot_dimension_numbers<[1], [0], [0], [1], [0, 0, 1, 1], [], []>} : vector<16x128xbf16>, vector<128x128xbf16>, vector<16x128xf32> -> vector<16x128xf32>
    %60 = arith.addf %54, %59 : vector<16x128xf32>
    %c3 = arith.constant 3 : index
    %c0_33 = arith.constant 0 : index
    %c0_34 = arith.constant 0 : index
    %61 = vector.load %arg11[%c3, %c0_33, %c0_34] : memref<7x16x128xbf16, #tpu.memory_space<vmem>>, vector<1x16x128xbf16>
    %62 = vector.shape_cast %61 : vector<1x16x128xbf16> to vector<16x128xbf16>
    %c3_35 = arith.constant 3 : index
    %c0_36 = arith.constant 0 : index
    %c0_37 = arith.constant 0 : index
    %63 = vector.load %arg4[%c3_35, %c0_36, %c0_37] : memref<5x128x128xbf16, #tpu.memory_space<vmem>>, vector<1x128x128xbf16>
    %64 = vector.shape_cast %63 : vector<1x128x128xbf16> to vector<128x128xbf16>
    %cst_38 = arith.constant dense<0.000000e+00> : vector<16x128xf32>
    %65 = tpu.matmul %62, %64, %cst_38 {dimension_numbers = #tpu.dot_dimension_numbers<[1], [0], [0], [1], [0, 0, 1, 1], [], []>} : vector<16x128xbf16>, vector<128x128xbf16>, vector<16x128xf32> -> vector<16x128xf32>
    %66 = arith.addf %60, %65 : vector<16x128xf32>
    %c4 = arith.constant 4 : index
    %c0_39 = arith.constant 0 : index
    %c0_40 = arith.constant 0 : index
    %67 = vector.load %arg11[%c4, %c0_39, %c0_40] : memref<7x16x128xbf16, #tpu.memory_space<vmem>>, vector<1x16x128xbf16>
    %68 = vector.shape_cast %67 : vector<1x16x128xbf16> to vector<16x128xbf16>
    %c4_41 = arith.constant 4 : index
    %c0_42 = arith.constant 0 : index
    %c0_43 = arith.constant 0 : index
    %69 = vector.load %arg4[%c4_41, %c0_42, %c0_43] : memref<5x128x128xbf16, #tpu.memory_space<vmem>>, vector<1x128x128xbf16>
    %70 = vector.shape_cast %69 : vector<1x128x128xbf16> to vector<128x128xbf16>
    %cst_44 = arith.constant dense<0.000000e+00> : vector<16x128xf32>
    %71 = tpu.matmul %68, %70, %cst_44 {dimension_numbers = #tpu.dot_dimension_numbers<[1], [0], [0], [1], [0, 0, 1, 1], [], []>} : vector<16x128xbf16>, vector<128x128xbf16>, vector<16x128xf32> -> vector<16x128xf32>
    %72 = arith.addf %66, %71 : vector<16x128xf32>
    %73 = vector.broadcast %40 : vector<1x128xf32> to vector<16x128xf32>
    %74 = arith.addf %72, %73 : vector<16x128xf32>
    %cst_45 = arith.constant 0.000000e+00 : f32
    %75 = vector.broadcast %cst_45 : f32 to vector<16x128xf32>
    %76 = arith.maximumf %74, %75 : vector<16x128xf32>
    %77 = arith.addf %41, %76 : vector<16x128xf32>
    %cst_46 = arith.constant 0.000000e+00 : f32
    %78 = vector.broadcast %cst_46 : f32 to vector<16x128xf32>
    %c2_47 = arith.constant 2 : index
    %c0_48 = arith.constant 0 : index
    %c0_49 = arith.constant 0 : index
    %79 = vector.load %arg11[%c2_47, %c0_48, %c0_49] : memref<7x16x128xbf16, #tpu.memory_space<vmem>>, vector<1x16x128xbf16>
    %80 = vector.shape_cast %79 : vector<1x16x128xbf16> to vector<16x128xbf16>
    %c0_50 = arith.constant 0 : index
    %c0_51 = arith.constant 0 : index
    %c0_52 = arith.constant 0 : index
    %81 = vector.load %arg4[%c0_50, %c0_51, %c0_52] : memref<5x128x128xbf16, #tpu.memory_space<vmem>>, vector<1x128x128xbf16>
    %82 = vector.shape_cast %81 : vector<1x128x128xbf16> to vector<128x128xbf16>
    %cst_53 = arith.constant dense<0.000000e+00> : vector<16x128xf32>
    %83 = tpu.matmul %80, %82, %cst_53 {dimension_numbers = #tpu.dot_dimension_numbers<[1], [0], [0], [1], [0, 0, 1, 1], [], []>} : vector<16x128xbf16>, vector<128x128xbf16>, vector<16x128xf32> -> vector<16x128xf32>
    %84 = arith.addf %78, %83 : vector<16x128xf32>
    %c3_54 = arith.constant 3 : index
    %c0_55 = arith.constant 0 : index
    %c0_56 = arith.constant 0 : index
    %85 = vector.load %arg11[%c3_54, %c0_55, %c0_56] : memref<7x16x128xbf16, #tpu.memory_space<vmem>>, vector<1x16x128xbf16>
    %86 = vector.shape_cast %85 : vector<1x16x128xbf16> to vector<16x128xbf16>
    %c1_57 = arith.constant 1 : index
    %c0_58 = arith.constant 0 : index
    %c0_59 = arith.constant 0 : index
    %87 = vector.load %arg4[%c1_57, %c0_58, %c0_59] : memref<5x128x128xbf16, #tpu.memory_space<vmem>>, vector<1x128x128xbf16>
    %88 = vector.shape_cast %87 : vector<1x128x128xbf16> to vector<128x128xbf16>
    %cst_60 = arith.constant dense<0.000000e+00> : vector<16x128xf32>
    %89 = tpu.matmul %86, %88, %cst_60 {dimension_numbers = #tpu.dot_dimension_numbers<[1], [0], [0], [1], [0, 0, 1, 1], [], []>} : vector<16x128xbf16>, vector<128x128xbf16>, vector<16x128xf32> -> vector<16x128xf32>
    %90 = arith.addf %84, %89 : vector<16x128xf32>
    %c4_61 = arith.constant 4 : index
    %c0_62 = arith.constant 0 : index
    %c0_63 = arith.constant 0 : index
    %91 = vector.load %arg11[%c4_61, %c0_62, %c0_63] : memref<7x16x128xbf16, #tpu.memory_space<vmem>>, vector<1x16x128xbf16>
    %92 = vector.shape_cast %91 : vector<1x16x128xbf16> to vector<16x128xbf16>
    %c2_64 = arith.constant 2 : index
    %c0_65 = arith.constant 0 : index
    %c0_66 = arith.constant 0 : index
    %93 = vector.load %arg4[%c2_64, %c0_65, %c0_66] : memref<5x128x128xbf16, #tpu.memory_space<vmem>>, vector<1x128x128xbf16>
    %94 = vector.shape_cast %93 : vector<1x128x128xbf16> to vector<128x128xbf16>
    %cst_67 = arith.constant dense<0.000000e+00> : vector<16x128xf32>
    %95 = tpu.matmul %92, %94, %cst_67 {dimension_numbers = #tpu.dot_dimension_numbers<[1], [0], [0], [1], [0, 0, 1, 1], [], []>} : vector<16x128xbf16>, vector<128x128xbf16>, vector<16x128xf32> -> vector<16x128xf32>
    %96 = arith.addf %90, %95 : vector<16x128xf32>
    %c5 = arith.constant 5 : index
    %c0_68 = arith.constant 0 : index
    %c0_69 = arith.constant 0 : index
    %97 = vector.load %arg11[%c5, %c0_68, %c0_69] : memref<7x16x128xbf16, #tpu.memory_space<vmem>>, vector<1x16x128xbf16>
    %98 = vector.shape_cast %97 : vector<1x16x128xbf16> to vector<16x128xbf16>
    %c3_70 = arith.constant 3 : index
    %c0_71 = arith.constant 0 : index
    %c0_72 = arith.constant 0 : index
    %99 = vector.load %arg4[%c3_70, %c0_71, %c0_72] : memref<5x128x128xbf16, #tpu.memory_space<vmem>>, vector<1x128x128xbf16>
    %100 = vector.shape_cast %99 : vector<1x128x128xbf16> to vector<128x128xbf16>
    %cst_73 = arith.constant dense<0.000000e+00> : vector<16x128xf32>
    %101 = tpu.matmul %98, %100, %cst_73 {dimension_numbers = #tpu.dot_dimension_numbers<[1], [0], [0], [1], [0, 0, 1, 1], [], []>} : vector<16x128xbf16>, vector<128x128xbf16>, vector<16x128xf32> -> vector<16x128xf32>
    %102 = arith.addf %96, %101 : vector<16x128xf32>
    %c6 = arith.constant 6 : index
    %c0_74 = arith.constant 0 : index
    %c0_75 = arith.constant 0 : index
    %103 = vector.load %arg11[%c6, %c0_74, %c0_75] : memref<7x16x128xbf16, #tpu.memory_space<vmem>>, vector<1x16x128xbf16>
    %104 = vector.shape_cast %103 : vector<1x16x128xbf16> to vector<16x128xbf16>
    %c4_76 = arith.constant 4 : index
    %c0_77 = arith.constant 0 : index
    %c0_78 = arith.constant 0 : index
    %105 = vector.load %arg4[%c4_76, %c0_77, %c0_78] : memref<5x128x128xbf16, #tpu.memory_space<vmem>>, vector<1x128x128xbf16>
    %106 = vector.shape_cast %105 : vector<1x128x128xbf16> to vector<128x128xbf16>
    %cst_79 = arith.constant dense<0.000000e+00> : vector<16x128xf32>
    %107 = tpu.matmul %104, %106, %cst_79 {dimension_numbers = #tpu.dot_dimension_numbers<[1], [0], [0], [1], [0, 0, 1, 1], [], []>} : vector<16x128xbf16>, vector<128x128xbf16>, vector<16x128xf32> -> vector<16x128xf32>
    %108 = arith.addf %102, %107 : vector<16x128xf32>
    %109 = vector.broadcast %40 : vector<1x128xf32> to vector<16x128xf32>
    %110 = arith.addf %108, %109 : vector<16x128xf32>
    %cst_80 = arith.constant 0.000000e+00 : f32
    %111 = vector.broadcast %cst_80 : f32 to vector<16x128xf32>
    %112 = arith.maximumf %110, %111 : vector<16x128xf32>
    %113 = arith.addf %77, %112 : vector<16x128xf32>
    %cst_81 = arith.constant 5.000000e-01 : f32
    %114 = vector.broadcast %cst_81 : f32 to vector<16x128xf32>
    %115 = arith.mulf %113, %114 : vector<16x128xf32>
    %116 = arith.truncf %115 : vector<16x128xf32> to vector<16x128xbf16>
    %c0_82 = arith.constant 0 : index
    %c0_83 = arith.constant 0 : index
    %117 = vector.load %arg6[%c0_82, %c0_83] : memref<128x128xbf16, #tpu.memory_space<vmem>>, vector<128x128xbf16>
    %cst_84 = arith.constant dense<0.000000e+00> : vector<16x128xf32>
    %118 = tpu.matmul %116, %117, %cst_84 {dimension_numbers = #tpu.dot_dimension_numbers<[1], [0], [0], [1], [0, 0, 1, 1], [], []>} : vector<16x128xbf16>, vector<128x128xbf16>, vector<16x128xf32> -> vector<16x128xf32>
    %c0_85 = arith.constant 0 : index
    %c0_86 = arith.constant 0 : index
    %119 = vector.load %arg7[%c0_85, %c0_86] : memref<1x128xf32, #tpu.memory_space<vmem>>, vector<1x128xf32>
    %120 = vector.broadcast %119 : vector<1x128xf32> to vector<16x128xf32>
    %121 = arith.addf %118, %120 : vector<16x128xf32>
    %cst_87 = arith.constant 0.000000e+00 : f32
    %122 = vector.broadcast %cst_87 : f32 to vector<16x128xf32>
    %123 = arith.maximumf %121, %122 : vector<16x128xf32>
    %124 = arith.truncf %123 : vector<16x128xf32> to vector<16x128xbf16>
    %c0_88 = arith.constant 0 : index
    %c0_89 = arith.constant 0 : index
    %125 = vector.load %arg8[%c0_88, %c0_89] : memref<128x128xbf16, #tpu.memory_space<vmem>>, vector<128x128xbf16>
    %cst_90 = arith.constant dense<0.000000e+00> : vector<16x128xf32>
    %126 = tpu.matmul %124, %125, %cst_90 {dimension_numbers = #tpu.dot_dimension_numbers<[1], [0], [0], [1], [0, 0, 1, 1], [], []>} : vector<16x128xbf16>, vector<128x128xbf16>, vector<16x128xf32> -> vector<16x128xf32>
    %c0_91 = arith.constant 0 : index
    %c0_92 = arith.constant 0 : index
    %127 = vector.load %arg9[%c0_91, %c0_92] : memref<1x128xf32, #tpu.memory_space<vmem>>, vector<1x128xf32>
    %128 = vector.broadcast %127 : vector<1x128xf32> to vector<16x128xf32>
    %129 = arith.addf %126, %128 : vector<16x128xf32>
    %c0_93 = arith.constant 0 : index
    %c0_94 = arith.constant 0 : index
    %130 = vector.load %arg10[%c0_93, %c0_94] : memref<16x128xf32, #tpu.memory_space<vmem>>, vector<16x128xf32>
    tpu.vector_store %arg10[%c0_93, %c0_94], %129 {strides = array<i32>} : memref<16x128xf32, #tpu.memory_space<vmem>>, vector<16x128xf32>,
    return
  }
  func.func @transform_0(%arg0: i32) -> (i32, i32, i32) {
    %c0_i32 = arith.constant 0 : i32
    %c0_i32_0 = arith.constant 0 : i32
    %c0_i32_1 = arith.constant 0 : i32
    return %c0_i32, %arg0, %c0_i32_0 : i32, i32, i32
  }
  func.func @transform_1(%arg0: i32) -> (i32, i32) {
    %c0_i32 = arith.constant 0 : i32
    %c0_i32_0 = arith.constant 0 : i32
    %c0_i32_1 = arith.constant 0 : i32
    return %c0_i32, %c0_i32_0 : i32, i32
  }
  func.func @transform_2(%arg0: i32) -> (i32, i32) {
    %c0_i32 = arith.constant 0 : i32
    %c0_i32_0 = arith.constant 0 : i32
    %c0_i32_1 = arith.constant 0 : i32
    return %c0_i32, %c0_i32_0 : i32, i32
  }
  func.func @transform_3(%arg0: i32) -> (i32, i32, i32) {
    %c0_i32 = arith.constant 0 : i32
    %c0_i32_0 = arith.constant 0 : i32
    %c0_i32_1 = arith.constant 0 : i32
    %c0_i32_2 = arith.constant 0 : i32
    return %c0_i32, %c0_i32_0, %c0_i32_1 : i32, i32, i32
  }
  func.func @transform_4(%arg0: i32) -> (i32, i32) {
    %c0_i32 = arith.constant 0 : i32
    %c0_i32_0 = arith.constant 0 : i32
    %c0_i32_1 = arith.constant 0 : i32
    return %c0_i32, %c0_i32_0 : i32, i32
  }
  func.func @transform_5(%arg0: i32) -> (i32, i32) {
    %c0_i32 = arith.constant 0 : i32
    %c0_i32_0 = arith.constant 0 : i32
    %c0_i32_1 = arith.constant 0 : i32
    return %c0_i32, %c0_i32_0 : i32, i32
  }
  func.func @transform_6(%arg0: i32) -> (i32, i32) {
    %c0_i32 = arith.constant 0 : i32
    %c0_i32_0 = arith.constant 0 : i32
    %c0_i32_1 = arith.constant 0 : i32
    return %c0_i32, %c0_i32_0 : i32, i32
  }
  func.func @transform_7(%arg0: i32) -> (i32, i32) {
    %c0_i32 = arith.constant 0 : i32
    %c0_i32_0 = arith.constant 0 : i32
    %c0_i32_1 = arith.constant 0 : i32
    return %c0_i32, %c0_i32_0 : i32, i32
  }
  func.func @transform_8(%arg0: i32) -> (i32, i32) {
    %c0_i32 = arith.constant 0 : i32
    %c0_i32_0 = arith.constant 0 : i32
    %c0_i32_1 = arith.constant 0 : i32
    return %c0_i32, %c0_i32_0 : i32, i32
  }
  func.func @transform_9(%arg0: i32) -> (i32, i32) {
    %c0_i32 = arith.constant 0 : i32
    %c0_i32_0 = arith.constant 0 : i32
    return %arg0, %c0_i32 : i32, i32
  }
}

</mosaic_0001>

<llo_original>
// kernel: conv_backend_forward.1
$region0: #{conv_backend_forward.1}
  #allocation0 [shape = 'u32[]', space=smem, size = 0x4, offset = 0x4, fixed_abs, tag = 'smem constant byte address 0x4 - core index']
  #allocation1 [shape = 'u32[144,128]{1,0:T(1,128)}', space=vmem, size = 0x12000, scoped, tag = 'internal scratch']
  #allocation2 [shape = 'bf16[7,16,128]{2,1,0:T(16,128)(2,1)}', space=vmem, size = 0x7000, scoped, tag = 'scratch operand']
  %s0 = inlined_call_operand.vmem [shape: bf16[32,16,8], index: 0, kind: input, shape index: {}]
  %s1 = inlined_call_operand.vmem [shape: bf16[40,128], index: 1, kind: input, shape index: {}]
  %s2 = inlined_call_operand.vmem [shape: f32[1,128], index: 2, kind: input, shape index: {}]
  %s3 = inlined_call_operand.vmem [shape: bf16[5,128,128], index: 3, kind: input, shape index: {}]
  %s4 = inlined_call_operand.vmem [shape: f32[1,128], index: 4, kind: input, shape index: {}]
  %s5 = inlined_call_operand.vmem [shape: bf16[128,128], index: 5, kind: input, shape index: {}]
  %s6 = inlined_call_operand.vmem [shape: f32[1,128], index: 6, kind: input, shape index: {}]
  %s7 = inlined_call_operand.vmem [shape: bf16[128,128], index: 7, kind: input, shape index: {}]
  %s8 = inlined_call_operand.vmem [shape: f32[1,128], index: 8, kind: input, shape index: {}]
  %s9 = inlined_call_operand.vmem [shape: f32[16,128], index: 9, kind: output, shape index: {}]
  %s10 = sld [smem:[#allocation0]]
  $region46: #{conv_backend_forward.1} parent=0
    _
  %s12 = ssub.s32 1, %s10
  %s13 = scalar_select 0, %s12, %s10
  // Predicated region
  $region2: #{conv_backend_forward.1} parent=0 // pred_check
    _
  $region3: #{conv_backend_forward.1} parent=0 // pred_check_branch
    %15 = sbr.rel (0) target = $region5
  $region4: #{conv_backend_forward.1} parent=0 // pred_region
    _
  $region5: #{conv_backend_forward.1} parent=0 // pred_fallthru
    _
  // Predicated region
  $region6: #{conv_backend_forward.1} parent=0 // pred_check
    _
  $region7: #{conv_backend_forward.1} parent=0 // pred_check_branch
    %17 = sbr.rel (0) target = $region9
  $region8: #{conv_backend_forward.1} parent=0 // pred_region
    _
  $region9: #{conv_backend_forward.1} parent=0 // pred_fallthru
    _
  // Predicated region
  $region10: #{conv_backend_forward.1} parent=0 // pred_check
    _
  $region11: #{conv_backend_forward.1} parent=0 // pred_check_branch
    %19 = sbr.rel (0) target = $region13
  $region12: #{conv_backend_forward.1} parent=0 // pred_region
    _
  $region13: #{conv_backend_forward.1} parent=0 // pred_fallthru
    _
  // Predicated region
  $region14: #{conv_backend_forward.1} parent=0 // pred_check
    _
  $region15: #{conv_backend_forward.1} parent=0 // pred_check_branch
    %21 = sbr.rel (0) target = $region17
  $region16: #{conv_backend_forward.1} parent=0 // pred_region
    _
  $region17: #{conv_backend_forward.1} parent=0 // pred_fallthru
    _
  // Predicated region
  $region18: #{conv_backend_forward.1} parent=0 // pred_check
    _
  $region19: #{conv_backend_forward.1} parent=0 // pred_check_branch
    %23 = sbr.rel (0) target = $region21
  $region20: #{conv_backend_forward.1} parent=0 // pred_region
    _
  $region21: #{conv_backend_forward.1} parent=0 // pred_fallthru
    _
  // Predicated region
  $region22: #{conv_backend_forward.1} parent=0 // pred_check
    _
  $region23: #{conv_backend_forward.1} parent=0 // pred_check_branch
    %25 = sbr.rel (0) target = $region25
  $region24: #{conv_backend_forward.1} parent=0 // pred_region
    _
  $region25: #{conv_backend_forward.1} parent=0 // pred_fallthru
    _
  // Predicated region
  $region26: #{conv_backend_forward.1} parent=0 // pred_check
    _
  $region27: #{conv_backend_forward.1} parent=0 // pred_check_branch
    %27 = sbr.rel (0) target = $region29
  $region28: #{conv_backend_forward.1} parent=0 // pred_region
    _
  $region29: #{conv_backend_forward.1} parent=0 // pred_fallthru
    _
  // Predicated region
  $region30: #{conv_backend_forward.1} parent=0 // pred_check
    _
  $region31: #{conv_backend_forward.1} parent=0 // pred_check_branch
    %29 = sbr.rel (0) target = $region33
  $region32: #{conv_backend_forward.1} parent=0 // pred_region
    _
  $region33: #{conv_backend_forward.1} parent=0 // pred_fallthru
    _
  // Predicated region
  $region34: #{conv_backend_forward.1} parent=0 // pred_check
    _
  $region35: #{conv_backend_forward.1} parent=0 // pred_check_branch
    %31 = sbr.rel (0) target = $region37
  $region36: #{conv_backend_forward.1} parent=0 // pred_region
    _
  $region37: #{conv_backend_forward.1} parent=0 // pred_fallthru
    _
  %v33 = vld [vmem:[%s1] sm:$0xf]
  %v34 = vld [vmem:[%s1 + $0x4] sm:$0xf]
  %v35 = vld [vmem:[%s1 + $0x8] sm:$0xf]
  %v36 = vld [vmem:[%s1 + $0xc] sm:$0xf]
  %v37 = vld [vmem:[%s1 + $0x10] sm:$0xf]
  %v38 = vld [vmem:[%s2] sm:$0x1]
  %v39 = vld [vmem:[%s0] sm:$0xf]
  %v40 = vld [vmem:[%s0 + $0x4] sm:$0xf]
  %v41 = vld [vmem:[%s0 + $0x8] sm:$0xf]
  %v42 = vld [vmem:[%s0 + $0xc] sm:$0xf]
  %v43 = vld [vmem:[%s0 + $0x10] sm:$0xf]
  %v44 = vld [vmem:[%s0 + $0x14] sm:$0xf]
  %v45 = vld [vmem:[%s0 + $0x18] sm:$0xf]
  %v46 = vld [vmem:[%s0 + $0x1c] sm:$0xf]
  %v47 = vld [vmem:[%s0 + $0x20] sm:$0xf]
  %v48 = vld [vmem:[%s0 + $0x24] sm:$0xf]
  %v49 = vld [vmem:[%s0 + $0x28] sm:$0xf]
  %v50 = vld [vmem:[%s0 + $0x2c] sm:$0xf]
  %v51 = vld [vmem:[%s0 + $0x30] sm:$0xf]
  %v52 = vld [vmem:[%s0 + $0x34] sm:$0xf]
  %v53 = vld [vmem:[%s0 + $0x38] sm:$0xf]
  %v54 = vld [vmem:[%s0 + $0x3c] sm:$0xf]
  %v55 = vld [vmem:[%s0 + $0x40] sm:$0xf]
  %v56 = vld [vmem:[%s0 + $0x44] sm:$0xf]
  %v57 = vld [vmem:[%s0 + $0x48] sm:$0xf]
  %v58 = vld [vmem:[%s0 + $0x4c] sm:$0xf]
  %v59 = vld [vmem:[%s0 + $0x50] sm:$0xf]
  %v60 = vld [vmem:[%s0 + $0x54] sm:$0xf]
  %v61 = vld [vmem:[%s0 + $0x58] sm:$0xf]
  %v62 = vld [vmem:[%s0 + $0x5c] sm:$0xf]
  %v63 = vld [vmem:[%s0 + $0x60] sm:$0xf]
  %v64 = vld [vmem:[%s0 + $0x64] sm:$0xf]
  %v65 = vld [vmem:[%s0 + $0x68] sm:$0xf]
  %v66 = vld [vmem:[%s0 + $0x6c] sm:$0xf]
  %v67 = vld [vmem:[%s0 + $0x70] sm:$0xf]
  %v68 = vld [vmem:[%s0 + $0x74] sm:$0xf]
  %v69 = vld [vmem:[%s0 + $0x78] sm:$0xf]
  %v70 = vld [vmem:[%s0 + $0x7c] sm:$0xf]
  %v71 = vld [vmem:[%s0 + $0x80] sm:$0xf]
  %v72 = vld [vmem:[%s0 + $0x84] sm:$0xf]
  %v73 = vld [vmem:[%s0 + $0x88] sm:$0xf]
  %v74 = vld [vmem:[%s0 + $0x8c] sm:$0xf]
  %v75 = vld [vmem:[%s0 + $0x90] sm:$0xf]
  %v76 = vld [vmem:[%s0 + $0x94] sm:$0xf]
  %v77 = vld [vmem:[%s0 + $0x98] sm:$0xf]
  %v78 = vld [vmem:[%s0 + $0x9c] sm:$0xf]
  %v79 = vld [vmem:[%s0 + $0xa0] sm:$0xf]
  %v80 = vld [vmem:[%s0 + $0xa4] sm:$0xf]
  %v81 = vld [vmem:[%s0 + $0xa8] sm:$0xf]
  %v82 = vld [vmem:[%s0 + $0xac] sm:$0xf]
  %v83 = vld [vmem:[%s0 + $0xb0] sm:$0xf]
  %v84 = vld [vmem:[%s0 + $0xb4] sm:$0xf]
  %v85 = vld [vmem:[%s0 + $0xb8] sm:$0xf]
  %v86 = vld [vmem:[%s0 + $0xbc] sm:$0xf]
  %v87 = vld [vmem:[%s0 + $0xc0] sm:$0xf]
  %v88 = vld [vmem:[%s0 + $0xc4] sm:$0xf]
  %v89 = vld [vmem:[%s0 + $0xc8] sm:$0xf]
  %v90 = vld [vmem:[%s0 + $0xcc] sm:$0xf]
  %v91 = vld [vmem:[%s0 + $0xd0] sm:$0xf]
  %v92 = vld [vmem:[%s0 + $0xd4] sm:$0xf]
  %v93 = vld [vmem:[%s0 + $0xd8] sm:$0xf]
  %v94 = vld [vmem:[%s0 + $0xdc] sm:$0xf]
  %v95 = vld [vmem:[%s0 + $0xe0] sm:$0xf]
  %v96 = vld [vmem:[%s0 + $0xe4] sm:$0xf]
  %v97 = vld [vmem:[%s0 + $0xe8] sm:$0xf]
  %v98 = vld [vmem:[%s0 + $0xec] sm:$0xf]
  %v99 = vld [vmem:[%s0 + $0xf0] sm:$0xf]
  %v100 = vld [vmem:[%s0 + $0xf4] sm:$0xf]
  %v115 = vunpack.c.l.b16 %v39
  %v116 = vunpack.c.l.b16 %v40
  %v117 = vunpack.c.l.b16 %v47
  %v118 = vunpack.c.l.b16 %v48
  %v119 = vunpack.c.l.b16 %v55
  %v120 = vunpack.c.l.b16 %v56
  %v121 = vunpack.c.l.b16 %v63
  %v122 = vunpack.c.l.b16 %v64
  %v123 = vunpack.c.l.b16 %v71
  %v124 = vunpack.c.l.b16 %v72
  %v125 = vunpack.c.l.b16 %v79
  %v126 = vunpack.c.l.b16 %v80
  %v127 = vunpack.c.l.b16 %v87
  %v128 = vunpack.c.l.b16 %v88
  %v129 = vpack.c.b16 %v116, %v115
  %v130 = vpack.c.b16 %v118, %v117
  %v131 = vpack.c.b16 %v120, %v119
  %v132 = vpack.c.b16 %v122, %v121
  %v133 = vpack.c.b16 %v124, %v123
  %v134 = vpack.c.b16 %v126, %v125
  %v135 = vpack.c.b16 %v128, %v127
  %v150 = vunpack.c.l.b16 %v41
  %v151 = vunpack.c.l.b16 %v42
  %v152 = vunpack.c.l.b16 %v49
  %v153 = vunpack.c.l.b16 %v50
  %v154 = vunpack.c.l.b16 %v57
  %v155 = vunpack.c.l.b16 %v58
  %v156 = vunpack.c.l.b16 %v65
  %v157 = vunpack.c.l.b16 %v66
  %v158 = vunpack.c.l.b16 %v73
  %v159 = vunpack.c.l.b16 %v74
  %v160 = vunpack.c.l.b16 %v81
  %v161 = vunpack.c.l.b16 %v82
  %v162 = vunpack.c.l.b16 %v89
  %v163 = vunpack.c.l.b16 %v90
  %v164 = vpack.c.b16 %v151, %v150
  %v165 = vpack.c.b16 %v153, %v152
  %v166 = vpack.c.b16 %v155, %v154
  %v167 = vpack.c.b16 %v157, %v156
  %v168 = vpack.c.b16 %v159, %v158
  %v169 = vpack.c.b16 %v161, %v160
  %v170 = vpack.c.b16 %v163, %v162
  %171 = vrot.lane.b32.xlu0 %v164, 8
  %v172 = vpop.permute.xlu0 %171
  %173 = vrot.lane.b32.xlu0 %v165, 8
  %v174 = vpop.permute.xlu0 %173
  %175 = vrot.lane.b32.xlu0 %v166, 8
  %v176 = vpop.permute.xlu0 %175
  %177 = vrot.lane.b32.xlu0 %v167, 8
  %v178 = vpop.permute.xlu0 %177
  %179 = vrot.lane.b32.xlu0 %v168, 8
  %v180 = vpop.permute.xlu0 %179
  %181 = vrot.lane.b32.xlu0 %v169, 8
  %v182 = vpop.permute.xlu0 %181
  %183 = vrot.lane.b32.xlu0 %v170, 8
  %v184 = vpop.permute.xlu0 %183
  %v199 = vunpack.c.l.b16 %v43
  %v200 = vunpack.c.l.b16 %v44
  %v201 = vunpack.c.l.b16 %v51
  %v202 = vunpack.c.l.b16 %v52
  %v203 = vunpack.c.l.b16 %v59
  %v204 = vunpack.c.l.b16 %v60
  %v205 = vunpack.c.l.b16 %v67
  %v206 = vunpack.c.l.b16 %v68
  %v207 = vunpack.c.l.b16 %v75
  %v208 = vunpack.c.l.b16 %v76
  %v209 = vunpack.c.l.b16 %v83
  %v210 = vunpack.c.l.b16 %v84
  %v211 = vunpack.c.l.b16 %v91
  %v212 = vunpack.c.l.b16 %v92
  %v213 = vpack.c.b16 %v200, %v199
  %v214 = vpack.c.b16 %v202, %v201
  %v215 = vpack.c.b16 %v204, %v203
  %v216 = vpack.c.b16 %v206, %v205
  %v217 = vpack.c.b16 %v208, %v207
  %v218 = vpack.c.b16 %v210, %v209
  %v219 = vpack.c.b16 %v212, %v211
  %220 = vrot.lane.b32.xlu0 %v213, 16
  %v221 = vpop.permute.xlu0 %220
  %222 = vrot.lane.b32.xlu0 %v214, 16
  %v223 = vpop.permute.xlu0 %222
  %224 = vrot.lane.b32.xlu0 %v215, 16
  %v225 = vpop.permute.xlu0 %224
  %226 = vrot.lane.b32.xlu0 %v216, 16
  %v227 = vpop.permute.xlu0 %226
  %228 = vrot.lane.b32.xlu0 %v217, 16
  %v229 = vpop.permute.xlu0 %228
  %230 = vrot.lane.b32.xlu0 %v218, 16
  %v231 = vpop.permute.xlu0 %230
  %232 = vrot.lane.b32.xlu0 %v219, 16
  %v233 = vpop.permute.xlu0 %232
  %v248 = vunpack.c.l.b16 %v45
  %v249 = vunpack.c.l.b16 %v46
  %v250 = vunpack.c.l.b16 %v53
  %v251 = vunpack.c.l.b16 %v54
  %v252 = vunpack.c.l.b16 %v61
  %v253 = vunpack.c.l.b16 %v62
  %v254 = vunpack.c.l.b16 %v69
  %v255 = vunpack.c.l.b16 %v70
  %v256 = vunpack.c.l.b16 %v77
  %v257 = vunpack.c.l.b16 %v78
  %v258 = vunpack.c.l.b16 %v85
  %v259 = vunpack.c.l.b16 %v86
  %v260 = vunpack.c.l.b16 %v93
  %v261 = vunpack.c.l.b16 %v94
  %v262 = vpack.c.b16 %v249, %v248
  %v263 = vpack.c.b16 %v251, %v250
  %v264 = vpack.c.b16 %v253, %v252
  %v265 = vpack.c.b16 %v255, %v254
  %v266 = vpack.c.b16 %v257, %v256
  %v267 = vpack.c.b16 %v259, %v258
  %v268 = vpack.c.b16 %v261, %v260
  %269 = vrot.lane.b32.xlu0 %v262, 24
  %v270 = vpop.permute.xlu0 %269
  %271 = vrot.lane.b32.xlu0 %v263, 24
  %v272 = vpop.permute.xlu0 %271
  %273 = vrot.lane.b32.xlu0 %v264, 24
  %v274 = vpop.permute.xlu0 %273
  %275 = vrot.lane.b32.xlu0 %v265, 24
  %v276 = vpop.permute.xlu0 %275
  %277 = vrot.lane.b32.xlu0 %v266, 24
  %v278 = vpop.permute.xlu0 %277
  %279 = vrot.lane.b32.xlu0 %v267, 24
  %v280 = vpop.permute.xlu0 %279
  %281 = vrot.lane.b32.xlu0 %v268, 24
  %v282 = vpop.permute.xlu0 %281
  %v285 = vunpack.c.l.b16 %v95
  %v286 = vunpack.c.l.b16 %v96
  %v287 = vpack.c.b16 %v286, %v285
  %288 = vrot.lane.b32.xlu0 %v130, 32
  %v289 = vpop.permute.xlu0 %288
  %290 = vrot.lane.b32.xlu0 %v131, 32
  %v291 = vpop.permute.xlu0 %290
  %292 = vrot.lane.b32.xlu0 %v132, 32
  %v293 = vpop.permute.xlu0 %292
  %294 = vrot.lane.b32.xlu0 %v133, 32
  %v295 = vpop.permute.xlu0 %294
  %296 = vrot.lane.b32.xlu0 %v134, 32
  %v297 = vpop.permute.xlu0 %296
  %298 = vrot.lane.b32.xlu0 %v135, 32
  %v299 = vpop.permute.xlu0 %298
  %300 = vrot.lane.b32.xlu0 %v287, 32
  %v301 = vpop.permute.xlu0 %300
  %vm302 = vcmask 64512
  %v305 = vsel %vm302, %v129, %v172
  %v308 = vsel %vm302, %v130, %v174
  %v311 = vsel %vm302, %v131, %v176
  %v314 = vsel %vm302, %v132, %v178
  %v317 = vsel %vm302, %v133, %v180
  %v320 = vsel %vm302, %v134, %v182
  %v323 = vsel %vm302, %v135, %v184
  %vm324 = vcmask 130048
  %v326 = vsel %vm324, %v305, %v221
  %v328 = vsel %vm324, %v308, %v223
  %v330 = vsel %vm324, %v311, %v225
  %v332 = vsel %vm324, %v314, %v227
  %v334 = vsel %vm324, %v317, %v229
  %v336 = vsel %vm324, %v320, %v231
  %v338 = vsel %vm324, %v323, %v233
  %vm339 = vcmask 195584
  %v341 = vsel %vm339, %v326, %v270
  %v343 = vsel %vm339, %v328, %v272
  %v345 = vsel %vm339, %v330, %v274
  %v347 = vsel %vm339, %v332, %v276
  %v349 = vsel %vm339, %v334, %v278
  %v351 = vsel %vm339, %v336, %v280
  %v353 = vsel %vm339, %v338, %v282
  %vm354 = vcmask 261120
  %v356 = vsel %vm354, %v341, %v289
  %v358 = vsel %vm354, %v343, %v291
  %v360 = vsel %vm354, %v345, %v293
  %v362 = vsel %vm354, %v347, %v295
  %v364 = vsel %vm354, %v349, %v297
  %v366 = vsel %vm354, %v351, %v299
  %v368 = vsel %vm354, %v353, %v301
  %369 = vrot.lane.b32.xlu0 %v262, 8
  %v370 = vpop.permute.xlu0 %369
  %371 = vrot.lane.b32.xlu0 %v263, 8
  %v372 = vpop.permute.xlu0 %371
  %373 = vrot.lane.b32.xlu0 %v264, 8
  %v374 = vpop.permute.xlu0 %373
  %375 = vrot.lane.b32.xlu0 %v265, 8
  %v376 = vpop.permute.xlu0 %375
  %377 = vrot.lane.b32.xlu0 %v266, 8
  %v378 = vpop.permute.xlu0 %377
  %379 = vrot.lane.b32.xlu0 %v267, 8
  %v380 = vpop.permute.xlu0 %379
  %381 = vrot.lane.b32.xlu0 %v268, 8
  %v382 = vpop.permute.xlu0 %381
  %383 = vrot.lane.b32.xlu0 %v130, 16
  %v384 = vpop.permute.xlu0 %383
  %385 = vrot.lane.b32.xlu0 %v131, 16
  %v386 = vpop.permute.xlu0 %385
  %387 = vrot.lane.b32.xlu0 %v132, 16
  %v388 = vpop.permute.xlu0 %387
  %389 = vrot.lane.b32.xlu0 %v133, 16
  %v390 = vpop.permute.xlu0 %389
  %391 = vrot.lane.b32.xlu0 %v134, 16
  %v392 = vpop.permute.xlu0 %391
  %393 = vrot.lane.b32.xlu0 %v135, 16
  %v394 = vpop.permute.xlu0 %393
  %395 = vrot.lane.b32.xlu0 %v287, 16
  %v396 = vpop.permute.xlu0 %395
  %v399 = vunpack.c.l.b16 %v97
  %v400 = vunpack.c.l.b16 %v98
  %v401 = vpack.c.b16 %v400, %v399
  %402 = vrot.lane.b32.xlu0 %v165, 24
  %v403 = vpop.permute.xlu0 %402
  %404 = vrot.lane.b32.xlu0 %v166, 24
  %v405 = vpop.permute.xlu0 %404
  %406 = vrot.lane.b32.xlu0 %v167, 24
  %v407 = vpop.permute.xlu0 %406
  %408 = vrot.lane.b32.xlu0 %v168, 24
  %v409 = vpop.permute.xlu0 %408
  %410 = vrot.lane.b32.xlu0 %v169, 24
  %v411 = vpop.permute.xlu0 %410
  %412 = vrot.lane.b32.xlu0 %v170, 24
  %v413 = vpop.permute.xlu0 %412
  %414 = vrot.lane.b32.xlu0 %v401, 24
  %v415 = vpop.permute.xlu0 %414
  %v418 = vunpack.c.l.b16 %v99
  %v419 = vunpack.c.l.b16 %v100
  %v420 = vpack.c.b16 %v419, %v418
  %421 = vrot.lane.b32.xlu0 %v214, 32
  %v422 = vpop.permute.xlu0 %421
  %423 = vrot.lane.b32.xlu0 %v215, 32
  %v424 = vpop.permute.xlu0 %423
  %425 = vrot.lane.b32.xlu0 %v216, 32
  %v426 = vpop.permute.xlu0 %425
  %427 = vrot.lane.b32.xlu0 %v217, 32
  %v428 = vpop.permute.xlu0 %427
  %429 = vrot.lane.b32.xlu0 %v218, 32
  %v430 = vpop.permute.xlu0 %429
  %431 = vrot.lane.b32.xlu0 %v219, 32
  %v432 = vpop.permute.xlu0 %431
  %433 = vrot.lane.b32.xlu0 %v420, 32
  %v434 = vpop.permute.xlu0 %433
  %v437 = vsel %vm302, %v213, %v370
  %v440 = vsel %vm302, %v214, %v372
  %v443 = vsel %vm302, %v215, %v374
  %v446 = vsel %vm302, %v216, %v376
  %v449 = vsel %vm302, %v217, %v378
  %v452 = vsel %vm302, %v218, %v380
  %v455 = vsel %vm302, %v219, %v382
  %v457 = vsel %vm324, %v437, %v384
  %v459 = vsel %vm324, %v440, %v386
  %v461 = vsel %vm324, %v443, %v388
  %v463 = vsel %vm324, %v446, %v390
  %v465 = vsel %vm324, %v449, %v392
  %v467 = vsel %vm324, %v452, %v394
  %v469 = vsel %vm324, %v455, %v396
  %v471 = vsel %vm339, %v457, %v403
  %v473 = vsel %vm339, %v459, %v405
  %v475 = vsel %vm339, %v461, %v407
  %v477 = vsel %vm339, %v463, %v409
  %v479 = vsel %vm339, %v465, %v411
  %v481 = vsel %vm339, %v467, %v413
  %v483 = vsel %vm339, %v469, %v415
  %v485 = vsel %vm354, %v471, %v422
  %v487 = vsel %vm354, %v473, %v424
  %v489 = vsel %vm354, %v475, %v426
  %v491 = vsel %vm354, %v477, %v428
  %v493 = vsel %vm354, %v479, %v430
  %v495 = vsel %vm354, %v481, %v432
  %v497 = vsel %vm354, %v483, %v434
  %v499 = vlaneseq
  %v500 = vshrl.u32 %v499, 7
  %v501 = vsub.s32 0, %v500
  %v502 = vrot.slane %v38, %v501
  %v509 = vunpack.c.l.b16 %v33
  %v510 = vunpack.c.l.b16 %v34
  %v511 = vunpack.c.l.b16 %v35
  %v512 = vunpack.c.l.b16 %v36
  %v513 = vunpack.c.l.b16 %v37
  %v514 = vpack.c.b16 %v510, %v509
  %v515 = vpack.c.b16 %v512, %v511
  %v516 = vpack.c.b16 %v513, %v513
  %vm519 = vcmask 326656
  %v520 = vsel %vm519, %v356, 0
  %v522 = vsel %vm519, %v358, 0
  %v524 = vsel %vm519, %v360, 0
  %v526 = vsel %vm519, %v362, 0
  %v528 = vsel %vm519, %v364, 0
  %v530 = vsel %vm519, %v366, 0
  %v532 = vsel %vm519, %v368, 0
  %v534 = vsel %vm519, %v485, 0
  %v536 = vsel %vm519, %v487, 0
  %v538 = vsel %vm519, %v489, 0
  %v540 = vsel %vm519, %v491, 0
  %v542 = vsel %vm519, %v493, 0
  %v544 = vsel %vm519, %v495, 0
  %v546 = vsel %vm519, %v497, 0
  %vm548 = vcmask 1043456
  %v550 = vsel %vm548, %v516, 0
  %552 = vmatprep.subr.bf16.mxu0 0
  %553 = vmatpush1.bf16.msra.mxu0 %v514
  %554 = vmatprep.subr.bf16.mxu0 0
  %555 = vmatpush1.bf16.msra.mxu0 %v515
  %556 = vmatprep.subr.bf16.mxu0 0
  %557 = vmatpush1.bf16.msra.mxu0 %v550
  %558 = vmatprep.subr.bf16.mxu0 0
  %559 = vmatpush1.bf16.msra.mxu0 0
  %560 = vmatprep.subr.bf16.mxu0 0
  %561 = vmatpush1.bf16.msra.mxu0 0
  %562 = vmatprep.subr.bf16.mxu0 0
  %563 = vmatpush1.bf16.msra.mxu0 0
  %564 = vmatprep.subr.bf16.mxu0 0
  %565 = vmatpush1.bf16.msra.mxu0 0
  %566 = vmatprep.subr.bf16.mxu0 0
  %567 = vmatpush1.bf16.msra.mxu0 0
  %568 = vmatprep.subr.bf16.mxu0 0
  %569 = vmatpush1.bf16.msra.mxu0 0
  %570 = vmatprep.subr.bf16.mxu0 0
  %571 = vmatpush1.bf16.msra.mxu0 0
  %572 = vmatprep.subr.bf16.mxu0 0
  %573 = vmatpush1.bf16.msra.mxu0 0
  %574 = vmatprep.subr.bf16.mxu0 0
  %575 = vmatpush1.bf16.msra.mxu0 0
  %576 = vmatprep.subr.bf16.mxu0 0
  %577 = vmatpush1.bf16.msra.mxu0 0
  %578 = vmatprep.subr.bf16.mxu0 0
  %579 = vmatpush1.bf16.msra.mxu0 0
  %580 = vmatprep.subr.bf16.mxu0 0
  %581 = vmatpush1.bf16.msra.mxu0 0
  %582 = vmatprep.subr.bf16.mxu0 0
  %583 = vmatpush1.bf16.msra.mxu0 0
  %584 = vmatprep.mubr.bf16.mxu0 0
  %585 = vmatmul.mubr.bf16.gmra.mrb[0].mxu0 %v520
  %v586 = vpop.f32.mrb[0].mxu0
  %v587 = vadd.f32 %v502, %v586
  %v588 = vpop.f32.mrb[0].mxu0
  %v589 = vpop.f32.mrb[0].mxu0
  %v590 = vadd.f32 %v502, %v589
  %v591 = vpop.f32.mrb[0].mxu0
  %592 = vmatprep.mubr.bf16.mxu0 0
  %593 = vmatmul.mubr.bf16.gmra.mrb[0].mxu0 %v522
  %v594 = vpop.f32.mrb[0].mxu0
  %v595 = vadd.f32 %v502, %v594
  %v596 = vpop.f32.mrb[0].mxu0
  %v597 = vpop.f32.mrb[0].mxu0
  %v598 = vadd.f32 %v502, %v597
  %v599 = vpop.f32.mrb[0].mxu0
  %600 = vmatprep.mubr.bf16.mxu0 0
  %601 = vmatmul.mubr.bf16.gmra.mrb[0].mxu0 %v524
  %v602 = vpop.f32.mrb[0].mxu0
  %v603 = vadd.f32 %v502, %v602
  %v604 = vpop.f32.mrb[0].mxu0
  %v605 = vpop.f32.mrb[0].mxu0
  %v606 = vadd.f32 %v502, %v605
  %v607 = vpop.f32.mrb[0].mxu0
  %608 = vmatprep.mubr.bf16.mxu0 0
  %609 = vmatmul.mubr.bf16.gmra.mrb[0].mxu0 %v526
  %v610 = vpop.f32.mrb[0].mxu0
  %v611 = vadd.f32 %v502, %v610
  %v612 = vpop.f32.mrb[0].mxu0
  %v613 = vpop.f32.mrb[0].mxu0
  %v614 = vadd.f32 %v502, %v613
  %v615 = vpop.f32.mrb[0].mxu0
  %616 = vmatprep.mubr.bf16.mxu0 0
  %617 = vmatmul.mubr.bf16.gmra.mrb[0].mxu0 %v528
  %v618 = vpop.f32.mrb[0].mxu0
  %v619 = vadd.f32 %v502, %v618
  %v620 = vpop.f32.mrb[0].mxu0
  %v621 = vpop.f32.mrb[0].mxu0
  %v622 = vadd.f32 %v502, %v621
  %v623 = vpop.f32.mrb[0].mxu0
  %624 = vmatprep.mubr.bf16.mxu0 0
  %625 = vmatmul.mubr.bf16.gmra.mrb[0].mxu0 %v530
  %v626 = vpop.f32.mrb[0].mxu0
  %v627 = vadd.f32 %v502, %v626
  %v628 = vpop.f32.mrb[0].mxu0
  %v629 = vpop.f32.mrb[0].mxu0
  %v630 = vadd.f32 %v502, %v629
  %v631 = vpop.f32.mrb[0].mxu0
  %632 = vmatprep.mubr.bf16.mxu0 0
  %633 = vmatmul.mubr.bf16.gmra.mrb[0].mxu0 %v532
  %v634 = vpop.f32.mrb[0].mxu0
  %v635 = vadd.f32 %v502, %v634
  %v636 = vpop.f32.mrb[0].mxu0
  %v637 = vpop.f32.mrb[0].mxu0
  %v638 = vadd.f32 %v502, %v637
  %v639 = vpop.f32.mrb[0].mxu0
  %640 = vmatprep.mubr.bf16.mxu0 0
  %641 = vmatmul.mubr.bf16.gmra.mrb[0].mxu0 %v534
  %v642 = vpop.f32.mrb[0].mxu0
  %v643 = vadd.f32 %v502, %v642
  %v644 = vpop.f32.mrb[0].mxu0
  %v645 = vpop.f32.mrb[0].mxu0
  %v646 = vadd.f32 %v502, %v645
  %v647 = vpop.f32.mrb[0].mxu0
  %648 = vmatprep.mubr.bf16.mxu0 0
  %649 = vmatmul.mubr.bf16.gmra.mrb[0].mxu0 %v536
  %v650 = vpop.f32.mrb[0].mxu0
  %v651 = vadd.f32 %v502, %v650
  %v652 = vpop.f32.mrb[0].mxu0
  %v653 = vpop.f32.mrb[0].mxu0
  %v654 = vadd.f32 %v502, %v653
  %v655 = vpop.f32.mrb[0].mxu0
  %656 = vmatprep.mubr.bf16.mxu0 0
  %657 = vmatmul.mubr.bf16.gmra.mrb[0].mxu0 %v538
  %v658 = vpop.f32.mrb[0].mxu0
  %v659 = vadd.f32 %v502, %v658
  %v660 = vpop.f32.mrb[0].mxu0
  %v661 = vpop.f32.mrb[0].mxu0
  %v662 = vadd.f32 %v502, %v661
  %v663 = vpop.f32.mrb[0].mxu0
  %664 = vmatprep.mubr.bf16.mxu0 0
  %665 = vmatmul.mubr.bf16.gmra.mrb[0].mxu0 %v540
  %v666 = vpop.f32.mrb[0].mxu0
  %v667 = vadd.f32 %v502, %v666
  %v668 = vpop.f32.mrb[0].mxu0
  %v669 = vpop.f32.mrb[0].mxu0
  %v670 = vadd.f32 %v502, %v669
  %v671 = vpop.f32.mrb[0].mxu0
  %672 = vmatprep.mubr.bf16.mxu0 0
  %673 = vmatmul.mubr.bf16.gmra.mrb[0].mxu0 %v542
  %v674 = vpop.f32.mrb[0].mxu0
  %v675 = vadd.f32 %v502, %v674
  %v676 = vpop.f32.mrb[0].mxu0
  %v677 = vpop.f32.mrb[0].mxu0
  %v678 = vadd.f32 %v502, %v677
  %v679 = vpop.f32.mrb[0].mxu0
  %680 = vmatprep.mubr.bf16.mxu0 0
  %681 = vmatmul.mubr.bf16.gmra.mrb[0].mxu0 %v544
  %v682 = vpop.f32.mrb[0].mxu0
  %v683 = vadd.f32 %v502, %v682
  %v684 = vpop.f32.mrb[0].mxu0
  %v685 = vpop.f32.mrb[0].mxu0
  %v686 = vadd.f32 %v502, %v685
  %v687 = vpop.f32.mrb[0].mxu0
  %688 = vmatprep.mubr.bf16.mxu0 0
  %689 = vmatmul.mubr.bf16.gmra.mrb[0].mxu0 %v546
  %v690 = vpop.f32.mrb[0].mxu0
  %v691 = vadd.f32 %v502, %v690
  %v692 = vpop.f32.mrb[0].mxu0
  %v693 = vpop.f32.mrb[0].mxu0
  %v694 = vadd.f32 %v502, %v693
  %v695 = vpop.f32.mrb[0].mxu0
  %696 = vdwg.mxu0
  %v697 = vmax.f32 %v587, 0.0
  %v698 = vmax.f32 %v590, 0.0
  %v699 = vmax.f32 %v595, 0.0
  %v700 = vmax.f32 %v598, 0.0
  %v701 = vmax.f32 %v603, 0.0
  %v702 = vmax.f32 %v606, 0.0
  %v703 = vmax.f32 %v611, 0.0
  %v704 = vmax.f32 %v614, 0.0
  %v705 = vmax.f32 %v619, 0.0
  %v706 = vmax.f32 %v622, 0.0
  %v707 = vmax.f32 %v627, 0.0
  %v708 = vmax.f32 %v630, 0.0
  %v709 = vmax.f32 %v635, 0.0
  %v710 = vmax.f32 %v638, 0.0
  %v711 = vmax.f32 %v643, 0.0
  %v712 = vmax.f32 %v646, 0.0
  %v713 = vmax.f32 %v651, 0.0
  %v714 = vmax.f32 %v654, 0.0
  %v715 = vmax.f32 %v659, 0.0
  %v716 = vmax.f32 %v662, 0.0
  %v717 = vmax.f32 %v667, 0.0
  %v718 = vmax.f32 %v670, 0.0
  %v719 = vmax.f32 %v675, 0.0
  %v720 = vmax.f32 %v678, 0.0
  %v721 = vmax.f32 %v683, 0.0
  %v722 = vmax.f32 %v686, 0.0
  %v723 = vmax.f32 %v691, 0.0
  %v724 = vmax.f32 %v694, 0.0
  %v725 = vmax.f32 %v697, %v711
  %v726 = vmax.f32 %v698, %v712
  %v727 = vmax.f32 %v699, %v713
  %v728 = vmax.f32 %v700, %v714
  %v729 = vmax.f32 %v701, %v715
  %v730 = vmax.f32 %v702, %v716
  %v731 = vmax.f32 %v703, %v717
  %v732 = vmax.f32 %v704, %v718
  %v733 = vmax.f32 %v705, %v719
  %v734 = vmax.f32 %v706, %v720
  %v735 = vmax.f32 %v707, %v721
  %v736 = vmax.f32 %v708, %v722
  %v737 = vmax.f32 %v709, %v723
  %v738 = vmax.f32 %v710, %v724
  %v739 = vpack.c.bf16 %v726, %v725
  %v740 = vpack.c.bf16 %v728, %v727
  %v741 = vpack.c.bf16 %v730, %v729
  %v742 = vpack.c.bf16 %v732, %v731
  %v743 = vpack.c.bf16 %v734, %v733
  %v744 = vpack.c.bf16 %v736, %v735
  %v745 = vpack.c.bf16 %v738, %v737
  %746 = vst [vmem:[#allocation2] sm:$0xff] %v739
  %747 = vst [vmem:[#allocation2 + $0x8] sm:$0xff] %v740
  %748 = vst [vmem:[#allocation2 + $0x10] sm:$0xff] %v741
  %749 = vst [vmem:[#allocation2 + $0x18] sm:$0xff] %v742
  %750 = vst [vmem:[#allocation2 + $0x20] sm:$0xff] %v743
  %751 = vst [vmem:[#allocation2 + $0x28] sm:$0xff] %v744
  %752 = vst [vmem:[#allocation2 + $0x30] sm:$0xff] %v745
  %v753 = vld [vmem:[%s4] sm:$0x1]
  %v754 = vld [vmem:[#allocation2] sm:$0xff]
  %v755 = vld [vmem:[%s3] sm:$0xf]
  %v756 = vld [vmem:[%s3 + $0x4] sm:$0xf]
  %v757 = vld [vmem:[%s3 + $0x8] sm:$0xf]
  %v758 = vld [vmem:[%s3 + $0xc] sm:$0xf]
  %v759 = vld [vmem:[%s3 + $0x10] sm:$0xf]
  %v760 = vld [vmem:[%s3 + $0x14] sm:$0xf]
  %v761 = vld [vmem:[%s3 + $0x18] sm:$0xf]
  %v762 = vld [vmem:[%s3 + $0x1c] sm:$0xf]
  %v763 = vld [vmem:[%s3 + $0x20] sm:$0xf]
  %v764 = vld [vmem:[%s3 + $0x24] sm:$0xf]
  %v765 = vld [vmem:[%s3 + $0x28] sm:$0xf]
  %v766 = vld [vmem:[%s3 + $0x2c] sm:$0xf]
  %v767 = vld [vmem:[%s3 + $0x30] sm:$0xf]
  %v768 = vld [vmem:[%s3 + $0x34] sm:$0xf]
  %v769 = vld [vmem:[%s3 + $0x38] sm:$0xf]
  %v770 = vld [vmem:[%s3 + $0x3c] sm:$0xf]
  %s771 = scalar_lea.vmem [#allocation2], 8
  %v772 = vld [vmem:[%s771] sm:$0xff]
  %s773 = scalar_lea.vmem %s3, 64
  %v774 = vld [vmem:[%s773] sm:$0xf]
  %v775 = vld [vmem:[%s773 + $0x4] sm:$0xf]
  %v776 = vld [vmem:[%s773 + $0x8] sm:$0xf]
  %v777 = vld [vmem:[%s773 + $0xc] sm:$0xf]
  %v778 = vld [vmem:[%s773 + $0x10] sm:$0xf]
  %v779 = vld [vmem:[%s773 + $0x14] sm:$0xf]
  %v780 = vld [vmem:[%s773 + $0x18] sm:$0xf]
  %v781 = vld [vmem:[%s773 + $0x1c] sm:$0xf]
  %v782 = vld [vmem:[%s773 + $0x20] sm:$0xf]
  %v783 = vld [vmem:[%s773 + $0x24] sm:$0xf]
  %v784 = vld [vmem:[%s773 + $0x28] sm:$0xf]
  %v785 = vld [vmem:[%s773 + $0x2c] sm:$0xf]
  %v786 = vld [vmem:[%s773 + $0x30] sm:$0xf]
  %v787 = vld [vmem:[%s773 + $0x34] sm:$0xf]
  %v788 = vld [vmem:[%s773 + $0x38] sm:$0xf]
  %v789 = vld [vmem:[%s773 + $0x3c] sm:$0xf]
  %v806 = vunpack.c.l.b16 %v774
  %v807 = vunpack.c.l.b16 %v775
  %v808 = vunpack.c.l.b16 %v776
  %v809 = vunpack.c.l.b16 %v777
  %v810 = vunpack.c.l.b16 %v778
  %v811 = vunpack.c.l.b16 %v779
  %v812 = vunpack.c.l.b16 %v780
  %v813 = vunpack.c.l.b16 %v781
  %v814 = vunpack.c.l.b16 %v782
  %v815 = vunpack.c.l.b16 %v783
  %v816 = vunpack.c.l.b16 %v784
  %v817 = vunpack.c.l.b16 %v785
  %v818 = vunpack.c.l.b16 %v786
  %v819 = vunpack.c.l.b16 %v787
  %v820 = vunpack.c.l.b16 %v788
  %v821 = vunpack.c.l.b16 %v789
  %v822 = vpack.c.b16 %v807, %v806
  %v823 = vpack.c.b16 %v809, %v808
  %v824 = vpack.c.b16 %v811, %v810
  %v825 = vpack.c.b16 %v813, %v812
  %v826 = vpack.c.b16 %v815, %v814
  %v827 = vpack.c.b16 %v817, %v816
  %v828 = vpack.c.b16 %v819, %v818
  %v829 = vpack.c.b16 %v821, %v820
  %838 = vmatprep.subr.bf16.mxu0 0
  %839 = vmatpush1.bf16.msra.mxu0 %v822
  %840 = vmatprep.subr.bf16.mxu0 0
  %841 = vmatpush1.bf16.msra.mxu0 %v823
  %842 = vmatprep.subr.bf16.mxu0 0
  %843 = vmatpush1.bf16.msra.mxu0 %v824
  %844 = vmatprep.subr.bf16.mxu0 0
  %845 = vmatpush1.bf16.msra.mxu0 %v825
  %846 = vmatprep.subr.bf16.mxu0 0
  %847 = vmatpush1.bf16.msra.mxu0 %v826
  %848 = vmatprep.subr.bf16.mxu0 0
  %849 = vmatpush1.bf16.msra.mxu0 %v827
  %850 = vmatprep.subr.bf16.mxu0 0
  %851 = vmatpush1.bf16.msra.mxu0 %v828
  %852 = vmatprep.subr.bf16.mxu0 0
  %853 = vmatpush1.bf16.msra.mxu0 %v829
  %854 = vmatprep.subr.bf16.mxu0 0
  %855 = vmatpush1.bf16.msra.mxu0 0
  %856 = vmatprep.subr.bf16.mxu0 0
  %857 = vmatpush1.bf16.msra.mxu0 0
  %858 = vmatprep.subr.bf16.mxu0 0
  %859 = vmatpush1.bf16.msra.mxu0 0
  %860 = vmatprep.subr.bf16.mxu0 0
  %861 = vmatpush1.bf16.msra.mxu0 0
  %862 = vmatprep.subr.bf16.mxu0 0
  %863 = vmatpush1.bf16.msra.mxu0 0
  %864 = vmatprep.subr.bf16.mxu0 0
  %865 = vmatpush1.bf16.msra.mxu0 0
  %866 = vmatprep.subr.bf16.mxu0 0
  %867 = vmatpush1.bf16.msra.mxu0 0
  %868 = vmatprep.subr.bf16.mxu0 0
  %869 = vmatpush1.bf16.msra.mxu0 0
  %870 = vmatprep.mubr.bf16.mxu0 0
  %871 = vmatmul.mubr.bf16.gmra.mrb[0].mxu0 %v772
  %v872 = vpop.f32.mrb[0].mxu0
  %v873 = vadd.f32 0.0, %v872
  %v874 = vpop.f32.mrb[0].mxu0
  %v875 = vpop.f32.mrb[0].mxu0
  %v876 = vadd.f32 0.0, %v875
  %v877 = vpop.f32.mrb[0].mxu0
  %878 = vdwg.mxu0
  %v895 = vunpack.c.l.b16 %v755
  %v896 = vunpack.c.l.b16 %v756
  %v897 = vunpack.c.l.b16 %v757
  %v898 = vunpack.c.l.b16 %v758
  %v899 = vunpack.c.l.b16 %v759
  %v900 = vunpack.c.l.b16 %v760
  %v901 = vunpack.c.l.b16 %v761
  %v902 = vunpack.c.l.b16 %v762
  %v903 = vunpack.c.l.b16 %v763
  %v904 = vunpack.c.l.b16 %v764
  %v905 = vunpack.c.l.b16 %v765
  %v906 = vunpack.c.l.b16 %v766
  %v907 = vunpack.c.l.b16 %v767
  %v908 = vunpack.c.l.b16 %v768
  %v909 = vunpack.c.l.b16 %v769
  %v910 = vunpack.c.l.b16 %v770
  %v911 = vpack.c.b16 %v896, %v895
  %v912 = vpack.c.b16 %v898, %v897
  %v913 = vpack.c.b16 %v900, %v899
  %v914 = vpack.c.b16 %v902, %v901
  %v915 = vpack.c.b16 %v904, %v903
  %v916 = vpack.c.b16 %v906, %v905
  %v917 = vpack.c.b16 %v908, %v907
  %v918 = vpack.c.b16 %v910, %v909
  %927 = vmatprep.subr.bf16.mxu0 0
  %928 = vmatpush1.bf16.msra.mxu0 %v911
  %929 = vmatprep.subr.bf16.mxu0 0
  %930 = vmatpush1.bf16.msra.mxu0 %v912
  %931 = vmatprep.subr.bf16.mxu0 0
  %932 = vmatpush1.bf16.msra.mxu0 %v913
  %933 = vmatprep.subr.bf16.mxu0 0
  %934 = vmatpush1.bf16.msra.mxu0 %v914
  %935 = vmatprep.subr.bf16.mxu0 0
  %936 = vmatpush1.bf16.msra.mxu0 %v915
  %937 = vmatprep.subr.bf16.mxu0 0
  %938 = vmatpush1.bf16.msra.mxu0 %v916
  %939 = vmatprep.subr.bf16.mxu0 0
  %940 = vmatpush1.bf16.msra.mxu0 %v917
  %941 = vmatprep.subr.bf16.mxu0 0
  %942 = vmatpush1.bf16.msra.mxu0 %v918
  %943 = vmatprep.subr.bf16.mxu0 0
  %944 = vmatpush1.bf16.msra.mxu0 0
  %945 = vmatprep.subr.bf16.mxu0 0
  %946 = vmatpush1.bf16.msra.mxu0 0
  %947 = vmatprep.subr.bf16.mxu0 0
  %948 = vmatpush1.bf16.msra.mxu0 0
  %949 = vmatprep.subr.bf16.mxu0 0
  %950 = vmatpush1.bf16.msra.mxu0 0
  %951 = vmatprep.subr.bf16.mxu0 0
  %952 = vmatpush1.bf16.msra.mxu0 0
  %953 = vmatprep.subr.bf16.mxu0 0
  %954 = vmatpush1.bf16.msra.mxu0 0
  %955 = vmatprep.subr.bf16.mxu0 0
  %956 = vmatpush1.bf16.msra.mxu0 0
  %957 = vmatprep.subr.bf16.mxu0 0
  %958 = vmatpush1.bf16.msra.mxu0 0
  %959 = vmatprep.mubr.bf16.mxu0 0
  %960 = vmatmul.mubr.bf16.gmra.mrb[0].mxu0 %v754
  %v961 = vpop.f32.mrb[0].mxu0
  %v962 = vadd.f32 %v873, %v961
  %v963 = vpop.f32.mrb[0].mxu0
  %v964 = vpop.f32.mrb[0].mxu0
  %v965 = vadd.f32 %v876, %v964
  %v966 = vpop.f32.mrb[0].mxu0
  %967 = vdwg.mxu0
  %s968 = scalar_lea.vmem [#allocation2], 16
  %v969 = vld [vmem:[%s968] sm:$0xff]
  %s970 = scalar_lea.vmem %s3, 128
  %v971 = vld [vmem:[%s970] sm:$0xf]
  %v972 = vld [vmem:[%s970 + $0x4] sm:$0xf]
  %v973 = vld [vmem:[%s970 + $0x8] sm:$0xf]
  %v974 = vld [vmem:[%s970 + $0xc] sm:$0xf]
  %v975 = vld [vmem:[%s970 + $0x10] sm:$0xf]
  %v976 = vld [vmem:[%s970 + $0x14] sm:$0xf]
  %v977 = vld [vmem:[%s970 + $0x18] sm:$0xf]
  %v978 = vld [vmem:[%s970 + $0x1c] sm:$0xf]
  %v979 = vld [vmem:[%s970 + $0x20] sm:$0xf]
  %v980 = vld [vmem:[%s970 + $0x24] sm:$0xf]
  %v981 = vld [vmem:[%s970 + $0x28] sm:$0xf]
  %v982 = vld [vmem:[%s970 + $0x2c] sm:$0xf]
  %v983 = vld [vmem:[%s970 + $0x30] sm:$0xf]
  %v984 = vld [vmem:[%s970 + $0x34] sm:$0xf]
  %v985 = vld [vmem:[%s970 + $0x38] sm:$0xf]
  %v986 = vld [vmem:[%s970 + $0x3c] sm:$0xf]
  %v1003 = vunpack.c.l.b16 %v971
  %v1004 = vunpack.c.l.b16 %v972
  %v1005 = vunpack.c.l.b16 %v973
  %v1006 = vunpack.c.l.b16 %v974
  %v1007 = vunpack.c.l.b16 %v975
  %v1008 = vunpack.c.l.b16 %v976
  %v1009 = vunpack.c.l.b16 %v977
  %v1010 = vunpack.c.l.b16 %v978
  %v1011 = vunpack.c.l.b16 %v979
  %v1012 = vunpack.c.l.b16 %v980
  %v1013 = vunpack.c.l.b16 %v981
  %v1014 = vunpack.c.l.b16 %v982
  %v1015 = vunpack.c.l.b16 %v983
  %v1016 = vunpack.c.l.b16 %v984
  %v1017 = vunpack.c.l.b16 %v985
  %v1018 = vunpack.c.l.b16 %v986
  %v1019 = vpack.c.b16 %v1004, %v1003
  %v1020 = vpack.c.b16 %v1006, %v1005
  %v1021 = vpack.c.b16 %v1008, %v1007
  %v1022 = vpack.c.b16 %v1010, %v1009
  %v1023 = vpack.c.b16 %v1012, %v1011
  %v1024 = vpack.c.b16 %v1014, %v1013
  %v1025 = vpack.c.b16 %v1016, %v1015
  %v1026 = vpack.c.b16 %v1018, %v1017
  %1035 = vmatprep.subr.bf16.mxu0 0
  %1036 = vmatpush1.bf16.msra.mxu0 %v1019
  %1037 = vmatprep.subr.bf16.mxu0 0
  %1038 = vmatpush1.bf16.msra.mxu0 %v1020
  %1039 = vmatprep.subr.bf16.mxu0 0
  %1040 = vmatpush1.bf16.msra.mxu0 %v1021
  %1041 = vmatprep.subr.bf16.mxu0 0
  %1042 = vmatpush1.bf16.msra.mxu0 %v1022
  %1043 = vmatprep.subr.bf16.mxu0 0
  %1044 = vmatpush1.bf16.msra.mxu0 %v1023
  %1045 = vmatprep.subr.bf16.mxu0 0
  %1046 = vmatpush1.bf16.msra.mxu0 %v1024
  %1047 = vmatprep.subr.bf16.mxu0 0
  %1048 = vmatpush1.bf16.msra.mxu0 %v1025
  %1049 = vmatprep.subr.bf16.mxu0 0
  %1050 = vmatpush1.bf16.msra.mxu0 %v1026
  %1051 = vmatprep.subr.bf16.mxu0 0
  %1052 = vmatpush1.bf16.msra.mxu0 0
  %1053 = vmatprep.subr.bf16.mxu0 0
  %1054 = vmatpush1.bf16.msra.mxu0 0
  %1055 = vmatprep.subr.bf16.mxu0 0
  %1056 = vmatpush1.bf16.msra.mxu0 0
  %1057 = vmatprep.subr.bf16.mxu0 0
  %1058 = vmatpush1.bf16.msra.mxu0 0
  %1059 = vmatprep.subr.bf16.mxu0 0
  %1060 = vmatpush1.bf16.msra.mxu0 0
  %1061 = vmatprep.subr.bf16.mxu0 0
  %1062 = vmatpush1.bf16.msra.mxu0 0
  %1063 = vmatprep.subr.bf16.mxu0 0
  %1064 = vmatpush1.bf16.msra.mxu0 0
  %1065 = vmatprep.subr.bf16.mxu0 0
  %1066 = vmatpush1.bf16.msra.mxu0 0
  %1067 = vmatprep.mubr.bf16.mxu0 0
  %1068 = vmatmul.mubr.bf16.gmra.mrb[0].mxu0 %v969
  %v1069 = vpop.f32.mrb[0].mxu0
  %v1070 = vadd.f32 0.0, %v1069
  %v1071 = vpop.f32.mrb[0].mxu0
  %v1072 = vpop.f32.mrb[0].mxu0
  %v1073 = vadd.f32 0.0, %v1072
  %v1074 = vpop.f32.mrb[0].mxu0
  %1075 = vdwg.mxu0
  %v1076 = vadd.f32 %v962, %v1070
  %v1077 = vadd.f32 %v965, %v1073
  %s1078 = scalar_lea.vmem [#allocation2], 24
  %v1079 = vld [vmem:[%s1078] sm:$0xff]
  %s1080 = scalar_lea.vmem %s3, 192
  %v1081 = vld [vmem:[%s1080] sm:$0xf]
  %v1082 = vld [vmem:[%s1080 + $0x4] sm:$0xf]
  %v1083 = vld [vmem:[%s1080 + $0x8] sm:$0xf]
  %v1084 = vld [vmem:[%s1080 + $0xc] sm:$0xf]
  %v1085 = vld [vmem:[%s1080 + $0x10] sm:$0xf]
  %v1086 = vld [vmem:[%s1080 + $0x14] sm:$0xf]
  %v1087 = vld [vmem:[%s1080 + $0x18] sm:$0xf]
  %v1088 = vld [vmem:[%s1080 + $0x1c] sm:$0xf]
  %v1089 = vld [vmem:[%s1080 + $0x20] sm:$0xf]
  %v1090 = vld [vmem:[%s1080 + $0x24] sm:$0xf]
  %v1091 = vld [vmem:[%s1080 + $0x28] sm:$0xf]
  %v1092 = vld [vmem:[%s1080 + $0x2c] sm:$0xf]
  %v1093 = vld [vmem:[%s1080 + $0x30] sm:$0xf]
  %v1094 = vld [vmem:[%s1080 + $0x34] sm:$0xf]
  %v1095 = vld [vmem:[%s1080 + $0x38] sm:$0xf]
  %v1096 = vld [vmem:[%s1080 + $0x3c] sm:$0xf]
  %v1113 = vunpack.c.l.b16 %v1081
  %v1114 = vunpack.c.l.b16 %v1082
  %v1115 = vunpack.c.l.b16 %v1083
  %v1116 = vunpack.c.l.b16 %v1084
  %v1117 = vunpack.c.l.b16 %v1085
  %v1118 = vunpack.c.l.b16 %v1086
  %v1119 = vunpack.c.l.b16 %v1087
  %v1120 = vunpack.c.l.b16 %v1088
  %v1121 = vunpack.c.l.b16 %v1089
  %v1122 = vunpack.c.l.b16 %v1090
  %v1123 = vunpack.c.l.b16 %v1091
  %v1124 = vunpack.c.l.b16 %v1092
  %v1125 = vunpack.c.l.b16 %v1093
  %v1126 = vunpack.c.l.b16 %v1094
  %v1127 = vunpack.c.l.b16 %v1095
  %v1128 = vunpack.c.l.b16 %v1096
  %v1129 = vpack.c.b16 %v1114, %v1113
  %v1130 = vpack.c.b16 %v1116, %v1115
  %v1131 = vpack.c.b16 %v1118, %v1117
  %v1132 = vpack.c.b16 %v1120, %v1119
  %v1133 = vpack.c.b16 %v1122, %v1121
  %v1134 = vpack.c.b16 %v1124, %v1123
  %v1135 = vpack.c.b16 %v1126, %v1125
  %v1136 = vpack.c.b16 %v1128, %v1127
  %1145 = vmatprep.subr.bf16.mxu0 0
  %1146 = vmatpush1.bf16.msra.mxu0 %v1129
  %1147 = vmatprep.subr.bf16.mxu0 0
  %1148 = vmatpush1.bf16.msra.mxu0 %v1130
  %1149 = vmatprep.subr.bf16.mxu0 0
  %1150 = vmatpush1.bf16.msra.mxu0 %v1131
  %1151 = vmatprep.subr.bf16.mxu0 0
  %1152 = vmatpush1.bf16.msra.mxu0 %v1132
  %1153 = vmatprep.subr.bf16.mxu0 0
  %1154 = vmatpush1.bf16.msra.mxu0 %v1133
  %1155 = vmatprep.subr.bf16.mxu0 0
  %1156 = vmatpush1.bf16.msra.mxu0 %v1134
  %1157 = vmatprep.subr.bf16.mxu0 0
  %1158 = vmatpush1.bf16.msra.mxu0 %v1135
  %1159 = vmatprep.subr.bf16.mxu0 0
  %1160 = vmatpush1.bf16.msra.mxu0 %v1136
  %1161 = vmatprep.subr.bf16.mxu0 0
  %1162 = vmatpush1.bf16.msra.mxu0 0
  %1163 = vmatprep.subr.bf16.mxu0 0
  %1164 = vmatpush1.bf16.msra.mxu0 0
  %1165 = vmatprep.subr.bf16.mxu0 0
  %1166 = vmatpush1.bf16.msra.mxu0 0
  %1167 = vmatprep.subr.bf16.mxu0 0
  %1168 = vmatpush1.bf16.msra.mxu0 0
  %1169 = vmatprep.subr.bf16.mxu0 0
  %1170 = vmatpush1.bf16.msra.mxu0 0
  %1171 = vmatprep.subr.bf16.mxu0 0
  %1172 = vmatpush1.bf16.msra.mxu0 0
  %1173 = vmatprep.subr.bf16.mxu0 0
  %1174 = vmatpush1.bf16.msra.mxu0 0
  %1175 = vmatprep.subr.bf16.mxu0 0
  %1176 = vmatpush1.bf16.msra.mxu0 0
  %1177 = vmatprep.mubr.bf16.mxu0 0
  %1178 = vmatmul.mubr.bf16.gmra.mrb[0].mxu0 %v1079
  %v1179 = vpop.f32.mrb[0].mxu0
  %v1180 = vadd.f32 0.0, %v1179
  %v1181 = vpop.f32.mrb[0].mxu0
  %v1182 = vpop.f32.mrb[0].mxu0
  %v1183 = vadd.f32 0.0, %v1182
  %v1184 = vpop.f32.mrb[0].mxu0
  %1185 = vdwg.mxu0
  %v1186 = vadd.f32 %v1076, %v1180
  %v1187 = vadd.f32 %v1077, %v1183
  %s1188 = scalar_lea.vmem [#allocation2], 32
  %v1189 = vld [vmem:[%s1188] sm:$0xff]
  %s1190 = scalar_lea.vmem %s3, 256
  %v1191 = vld [vmem:[%s1190] sm:$0xf]
  %v1192 = vld [vmem:[%s1190 + $0x4] sm:$0xf]
  %v1193 = vld [vmem:[%s1190 + $0x8] sm:$0xf]
  %v1194 = vld [vmem:[%s1190 + $0xc] sm:$0xf]
  %v1195 = vld [vmem:[%s1190 + $0x10] sm:$0xf]
  %v1196 = vld [vmem:[%s1190 + $0x14] sm:$0xf]
  %v1197 = vld [vmem:[%s1190 + $0x18] sm:$0xf]
  %v1198 = vld [vmem:[%s1190 + $0x1c] sm:$0xf]
  %v1199 = vld [vmem:[%s1190 + $0x20] sm:$0xf]
  %v1200 = vld [vmem:[%s1190 + $0x24] sm:$0xf]
  %v1201 = vld [vmem:[%s1190 + $0x28] sm:$0xf]
  %v1202 = vld [vmem:[%s1190 + $0x2c] sm:$0xf]
  %v1203 = vld [vmem:[%s1190 + $0x30] sm:$0xf]
  %v1204 = vld [vmem:[%s1190 + $0x34] sm:$0xf]
  %v1205 = vld [vmem:[%s1190 + $0x38] sm:$0xf]
  %v1206 = vld [vmem:[%s1190 + $0x3c] sm:$0xf]
  %v1223 = vunpack.c.l.b16 %v1191
  %v1224 = vunpack.c.l.b16 %v1192
  %v1225 = vunpack.c.l.b16 %v1193
  %v1226 = vunpack.c.l.b16 %v1194
  %v1227 = vunpack.c.l.b16 %v1195
  %v1228 = vunpack.c.l.b16 %v1196
  %v1229 = vunpack.c.l.b16 %v1197
  %v1230 = vunpack.c.l.b16 %v1198
  %v1231 = vunpack.c.l.b16 %v1199
  %v1232 = vunpack.c.l.b16 %v1200
  %v1233 = vunpack.c.l.b16 %v1201
  %v1234 = vunpack.c.l.b16 %v1202
  %v1235 = vunpack.c.l.b16 %v1203
  %v1236 = vunpack.c.l.b16 %v1204
  %v1237 = vunpack.c.l.b16 %v1205
  %v1238 = vunpack.c.l.b16 %v1206
  %v1239 = vpack.c.b16 %v1224, %v1223
  %v1240 = vpack.c.b16 %v1226, %v1225
  %v1241 = vpack.c.b16 %v1228, %v1227
  %v1242 = vpack.c.b16 %v1230, %v1229
  %v1243 = vpack.c.b16 %v1232, %v1231
  %v1244 = vpack.c.b16 %v1234, %v1233
  %v1245 = vpack.c.b16 %v1236, %v1235
  %v1246 = vpack.c.b16 %v1238, %v1237
  %1255 = vmatprep.subr.bf16.mxu0 0
  %1256 = vmatpush1.bf16.msra.mxu0 %v1239
  %1257 = vmatprep.subr.bf16.mxu0 0
  %1258 = vmatpush1.bf16.msra.mxu0 %v1240
  %1259 = vmatprep.subr.bf16.mxu0 0
  %1260 = vmatpush1.bf16.msra.mxu0 %v1241
  %1261 = vmatprep.subr.bf16.mxu0 0
  %1262 = vmatpush1.bf16.msra.mxu0 %v1242
  %1263 = vmatprep.subr.bf16.mxu0 0
  %1264 = vmatpush1.bf16.msra.mxu0 %v1243
  %1265 = vmatprep.subr.bf16.mxu0 0
  %1266 = vmatpush1.bf16.msra.mxu0 %v1244
  %1267 = vmatprep.subr.bf16.mxu0 0
  %1268 = vmatpush1.bf16.msra.mxu0 %v1245
  %1269 = vmatprep.subr.bf16.mxu0 0
  %1270 = vmatpush1.bf16.msra.mxu0 %v1246
  %1271 = vmatprep.subr.bf16.mxu0 0
  %1272 = vmatpush1.bf16.msra.mxu0 0
  %1273 = vmatprep.subr.bf16.mxu0 0
  %1274 = vmatpush1.bf16.msra.mxu0 0
  %1275 = vmatprep.subr.bf16.mxu0 0
  %1276 = vmatpush1.bf16.msra.mxu0 0
  %1277 = vmatprep.subr.bf16.mxu0 0
  %1278 = vmatpush1.bf16.msra.mxu0 0
  %1279 = vmatprep.subr.bf16.mxu0 0
  %1280 = vmatpush1.bf16.msra.mxu0 0
  %1281 = vmatprep.subr.bf16.mxu0 0
  %1282 = vmatpush1.bf16.msra.mxu0 0
  %1283 = vmatprep.subr.bf16.mxu0 0
  %1284 = vmatpush1.bf16.msra.mxu0 0
  %1285 = vmatprep.subr.bf16.mxu0 0
  %1286 = vmatpush1.bf16.msra.mxu0 0
  %1287 = vmatprep.mubr.bf16.mxu0 0
  %1288 = vmatmul.mubr.bf16.gmra.mrb[0].mxu0 %v1189
  %v1289 = vpop.f32.mrb[0].mxu0
  %v1290 = vadd.f32 0.0, %v1289
  %v1291 = vpop.f32.mrb[0].mxu0
  %v1292 = vpop.f32.mrb[0].mxu0
  %v1293 = vadd.f32 0.0, %v1292
  %v1294 = vpop.f32.mrb[0].mxu0
  %1295 = vdwg.mxu0
  %v1296 = vadd.f32 %v1186, %v1290
  %v1297 = vadd.f32 %v1187, %v1293
  %v1299 = vlaneseq
  %v1300 = vshrl.u32 %v1299, 7
  %v1301 = vsub.s32 0, %v1300
  %v1302 = vrot.slane %v753, %v1301
  %v1304 = vadd.f32 %v1296, %v1302
  %v1305 = vadd.f32 %v1297, %v1302
  %v1306 = vmax.f32 %v1304, 0.0
  %v1307 = vmax.f32 %v1305, 0.0
  %v1308 = vadd.f32 %v1306, 0.0
  %v1309 = vadd.f32 %v1307, 0.0
  %1310 = vmatprep.subr.bf16.mxu0 0
  %1311 = vmatpush1.bf16.msra.mxu0 %v822
  %1312 = vmatprep.subr.bf16.mxu0 0
  %1313 = vmatpush1.bf16.msra.mxu0 %v823
  %1314 = vmatprep.subr.bf16.mxu0 0
  %1315 = vmatpush1.bf16.msra.mxu0 %v824
  %1316 = vmatprep.subr.bf16.mxu0 0
  %1317 = vmatpush1.bf16.msra.mxu0 %v825
  %1318 = vmatprep.subr.bf16.mxu0 0
  %1319 = vmatpush1.bf16.msra.mxu0 %v826
  %1320 = vmatprep.subr.bf16.mxu0 0
  %1321 = vmatpush1.bf16.msra.mxu0 %v827
  %1322 = vmatprep.subr.bf16.mxu0 0
  %1323 = vmatpush1.bf16.msra.mxu0 %v828
  %1324 = vmatprep.subr.bf16.mxu0 0
  %1325 = vmatpush1.bf16.msra.mxu0 %v829
  %1326 = vmatprep.subr.bf16.mxu0 0
  %1327 = vmatpush1.bf16.msra.mxu0 0
  %1328 = vmatprep.subr.bf16.mxu0 0
  %1329 = vmatpush1.bf16.msra.mxu0 0
  %1330 = vmatprep.subr.bf16.mxu0 0
  %1331 = vmatpush1.bf16.msra.mxu0 0
  %1332 = vmatprep.subr.bf16.mxu0 0
  %1333 = vmatpush1.bf16.msra.mxu0 0
  %1334 = vmatprep.subr.bf16.mxu0 0
  %1335 = vmatpush1.bf16.msra.mxu0 0
  %1336 = vmatprep.subr.bf16.mxu0 0
  %1337 = vmatpush1.bf16.msra.mxu0 0
  %1338 = vmatprep.subr.bf16.mxu0 0
  %1339 = vmatpush1.bf16.msra.mxu0 0
  %1340 = vmatprep.subr.bf16.mxu0 0
  %1341 = vmatpush1.bf16.msra.mxu0 0
  %1342 = vmatprep.mubr.bf16.mxu0 0
  %1343 = vmatmul.mubr.bf16.gmra.mrb[0].mxu0 %v1079
  %v1344 = vpop.f32.mrb[0].mxu0
  %v1345 = vadd.f32 0.0, %v1344
  %v1346 = vpop.f32.mrb[0].mxu0
  %v1347 = vpop.f32.mrb[0].mxu0
  %v1348 = vadd.f32 0.0, %v1347
  %v1349 = vpop.f32.mrb[0].mxu0
  %1350 = vdwg.mxu0
  %1351 = vmatprep.subr.bf16.mxu0 0
  %1352 = vmatpush1.bf16.msra.mxu0 %v911
  %1353 = vmatprep.subr.bf16.mxu0 0
  %1354 = vmatpush1.bf16.msra.mxu0 %v912
  %1355 = vmatprep.subr.bf16.mxu0 0
  %1356 = vmatpush1.bf16.msra.mxu0 %v913
  %1357 = vmatprep.subr.bf16.mxu0 0
  %1358 = vmatpush1.bf16.msra.mxu0 %v914
  %1359 = vmatprep.subr.bf16.mxu0 0
  %1360 = vmatpush1.bf16.msra.mxu0 %v915
  %1361 = vmatprep.subr.bf16.mxu0 0
  %1362 = vmatpush1.bf16.msra.mxu0 %v916
  %1363 = vmatprep.subr.bf16.mxu0 0
  %1364 = vmatpush1.bf16.msra.mxu0 %v917
  %1365 = vmatprep.subr.bf16.mxu0 0
  %1366 = vmatpush1.bf16.msra.mxu0 %v918
  %1367 = vmatprep.subr.bf16.mxu0 0
  %1368 = vmatpush1.bf16.msra.mxu0 0
  %1369 = vmatprep.subr.bf16.mxu0 0
  %1370 = vmatpush1.bf16.msra.mxu0 0
  %1371 = vmatprep.subr.bf16.mxu0 0
  %1372 = vmatpush1.bf16.msra.mxu0 0
  %1373 = vmatprep.subr.bf16.mxu0 0
  %1374 = vmatpush1.bf16.msra.mxu0 0
  %1375 = vmatprep.subr.bf16.mxu0 0
  %1376 = vmatpush1.bf16.msra.mxu0 0
  %1377 = vmatprep.subr.bf16.mxu0 0
  %1378 = vmatpush1.bf16.msra.mxu0 0
  %1379 = vmatprep.subr.bf16.mxu0 0
  %1380 = vmatpush1.bf16.msra.mxu0 0
  %1381 = vmatprep.subr.bf16.mxu0 0
  %1382 = vmatpush1.bf16.msra.mxu0 0
  %1383 = vmatprep.mubr.bf16.mxu0 0
  %1384 = vmatmul.mubr.bf16.gmra.mrb[0].mxu0 %v969
  %v1385 = vpop.f32.mrb[0].mxu0
  %v1386 = vadd.f32 %v1345, %v1385
  %v1387 = vpop.f32.mrb[0].mxu0
  %v1388 = vpop.f32.mrb[0].mxu0
  %v1389 = vadd.f32 %v1348, %v1388
  %v1390 = vpop.f32.mrb[0].mxu0
  %1391 = vdwg.mxu0
  %1392 = vmatprep.subr.bf16.mxu0 0
  %1393 = vmatpush1.bf16.msra.mxu0 %v1019
  %1394 = vmatprep.subr.bf16.mxu0 0
  %1395 = vmatpush1.bf16.msra.mxu0 %v1020
  %1396 = vmatprep.subr.bf16.mxu0 0
  %1397 = vmatpush1.bf16.msra.mxu0 %v1021
  %1398 = vmatprep.subr.bf16.mxu0 0
  %1399 = vmatpush1.bf16.msra.mxu0 %v1022
  %1400 = vmatprep.subr.bf16.mxu0 0
  %1401 = vmatpush1.bf16.msra.mxu0 %v1023
  %1402 = vmatprep.subr.bf16.mxu0 0
  %1403 = vmatpush1.bf16.msra.mxu0 %v1024
  %1404 = vmatprep.subr.bf16.mxu0 0
  %1405 = vmatpush1.bf16.msra.mxu0 %v1025
  %1406 = vmatprep.subr.bf16.mxu0 0
  %1407 = vmatpush1.bf16.msra.mxu0 %v1026
  %1408 = vmatprep.subr.bf16.mxu0 0
  %1409 = vmatpush1.bf16.msra.mxu0 0
  %1410 = vmatprep.subr.bf16.mxu0 0
  %1411 = vmatpush1.bf16.msra.mxu0 0
  %1412 = vmatprep.subr.bf16.mxu0 0
  %1413 = vmatpush1.bf16.msra.mxu0 0
  %1414 = vmatprep.subr.bf16.mxu0 0
  %1415 = vmatpush1.bf16.msra.mxu0 0
  %1416 = vmatprep.subr.bf16.mxu0 0
  %1417 = vmatpush1.bf16.msra.mxu0 0
  %1418 = vmatprep.subr.bf16.mxu0 0
  %1419 = vmatpush1.bf16.msra.mxu0 0
  %1420 = vmatprep.subr.bf16.mxu0 0
  %1421 = vmatpush1.bf16.msra.mxu0 0
  %1422 = vmatprep.subr.bf16.mxu0 0
  %1423 = vmatpush1.bf16.msra.mxu0 0
  %1424 = vmatprep.mubr.bf16.mxu0 0
  %1425 = vmatmul.mubr.bf16.gmra.mrb[0].mxu0 %v1189
  %v1426 = vpop.f32.mrb[0].mxu0
  %v1427 = vadd.f32 0.0, %v1426
  %v1428 = vpop.f32.mrb[0].mxu0
  %v1429 = vpop.f32.mrb[0].mxu0
  %v1430 = vadd.f32 0.0, %v1429
  %v1431 = vpop.f32.mrb[0].mxu0
  %1432 = vdwg.mxu0
  %v1433 = vadd.f32 %v1386, %v1427
  %v1434 = vadd.f32 %v1389, %v1430
  %s1435 = scalar_lea.vmem [#allocation2], 40
  %v1436 = vld [vmem:[%s1435] sm:$0xff]
  %1437 = vmatprep.subr.bf16.mxu0 0
  %1438 = vmatpush1.bf16.msra.mxu0 %v1129
  %1439 = vmatprep.subr.bf16.mxu0 0
  %1440 = vmatpush1.bf16.msra.mxu0 %v1130
  %1441 = vmatprep.subr.bf16.mxu0 0
  %1442 = vmatpush1.bf16.msra.mxu0 %v1131
  %1443 = vmatprep.subr.bf16.mxu0 0
  %1444 = vmatpush1.bf16.msra.mxu0 %v1132
  %1445 = vmatprep.subr.bf16.mxu0 0
  %1446 = vmatpush1.bf16.msra.mxu0 %v1133
  %1447 = vmatprep.subr.bf16.mxu0 0
  %1448 = vmatpush1.bf16.msra.mxu0 %v1134
  %1449 = vmatprep.subr.bf16.mxu0 0
  %1450 = vmatpush1.bf16.msra.mxu0 %v1135
  %1451 = vmatprep.subr.bf16.mxu0 0
  %1452 = vmatpush1.bf16.msra.mxu0 %v1136
  %1453 = vmatprep.subr.bf16.mxu0 0
  %1454 = vmatpush1.bf16.msra.mxu0 0
  %1455 = vmatprep.subr.bf16.mxu0 0
  %1456 = vmatpush1.bf16.msra.mxu0 0
  %1457 = vmatprep.subr.bf16.mxu0 0
  %1458 = vmatpush1.bf16.msra.mxu0 0
  %1459 = vmatprep.subr.bf16.mxu0 0
  %1460 = vmatpush1.bf16.msra.mxu0 0
  %1461 = vmatprep.subr.bf16.mxu0 0
  %1462 = vmatpush1.bf16.msra.mxu0 0
  %1463 = vmatprep.subr.bf16.mxu0 0
  %1464 = vmatpush1.bf16.msra.mxu0 0
  %1465 = vmatprep.subr.bf16.mxu0 0
  %1466 = vmatpush1.bf16.msra.mxu0 0
  %1467 = vmatprep.subr.bf16.mxu0 0
  %1468 = vmatpush1.bf16.msra.mxu0 0
  %1469 = vmatprep.mubr.bf16.mxu0 0
  %1470 = vmatmul.mubr.bf16.gmra.mrb[0].mxu0 %v1436
  %v1471 = vpop.f32.mrb[0].mxu0
  %v1472 = vadd.f32 0.0, %v1471
  %v1473 = vpop.f32.mrb[0].mxu0
  %v1474 = vpop.f32.mrb[0].mxu0
  %v1475 = vadd.f32 0.0, %v1474
  %v1476 = vpop.f32.mrb[0].mxu0
  %1477 = vdwg.mxu0
  %v1478 = vadd.f32 %v1433, %v1472
  %v1479 = vadd.f32 %v1434, %v1475
  %s1480 = scalar_lea.vmem [#allocation2], 48
  %v1481 = vld [vmem:[%s1480] sm:$0xff]
  %1482 = vmatprep.subr.bf16.mxu0 0
  %1483 = vmatpush1.bf16.msra.mxu0 %v1239
  %1484 = vmatprep.subr.bf16.mxu0 0
  %1485 = vmatpush1.bf16.msra.mxu0 %v1240
  %1486 = vmatprep.subr.bf16.mxu0 0
  %1487 = vmatpush1.bf16.msra.mxu0 %v1241
  %1488 = vmatprep.subr.bf16.mxu0 0
  %1489 = vmatpush1.bf16.msra.mxu0 %v1242
  %1490 = vmatprep.subr.bf16.mxu0 0
  %1491 = vmatpush1.bf16.msra.mxu0 %v1243
  %1492 = vmatprep.subr.bf16.mxu0 0
  %1493 = vmatpush1.bf16.msra.mxu0 %v1244
  %1494 = vmatprep.subr.bf16.mxu0 0
  %1495 = vmatpush1.bf16.msra.mxu0 %v1245
  %1496 = vmatprep.subr.bf16.mxu0 0
  %1497 = vmatpush1.bf16.msra.mxu0 %v1246
  %1498 = vmatprep.subr.bf16.mxu0 0
  %1499 = vmatpush1.bf16.msra.mxu0 0
  %1500 = vmatprep.subr.bf16.mxu0 0
  %1501 = vmatpush1.bf16.msra.mxu0 0
  %1502 = vmatprep.subr.bf16.mxu0 0
  %1503 = vmatpush1.bf16.msra.mxu0 0
  %1504 = vmatprep.subr.bf16.mxu0 0
  %1505 = vmatpush1.bf16.msra.mxu0 0
  %1506 = vmatprep.subr.bf16.mxu0 0
  %1507 = vmatpush1.bf16.msra.mxu0 0
  %1508 = vmatprep.subr.bf16.mxu0 0
  %1509 = vmatpush1.bf16.msra.mxu0 0
  %1510 = vmatprep.subr.bf16.mxu0 0
  %1511 = vmatpush1.bf16.msra.mxu0 0
  %1512 = vmatprep.subr.bf16.mxu0 0
  %1513 = vmatpush1.bf16.msra.mxu0 0
  %1514 = vmatprep.mubr.bf16.mxu0 0
  %1515 = vmatmul.mubr.bf16.gmra.mrb[0].mxu0 %v1481
  %v1516 = vpop.f32.mrb[0].mxu0
  %v1517 = vadd.f32 0.0, %v1516
  %v1518 = vpop.f32.mrb[0].mxu0
  %v1519 = vpop.f32.mrb[0].mxu0
  %v1520 = vadd.f32 0.0, %v1519
  %v1521 = vpop.f32.mrb[0].mxu0
  %1522 = vdwg.mxu0
  %v1523 = vadd.f32 %v1478, %v1517
  %v1524 = vadd.f32 %v1479, %v1520
  %v1525 = vadd.f32 %v1523, %v1302
  %v1526 = vadd.f32 %v1524, %v1302
  %v1527 = vmax.f32 %v1525, 0.0
  %v1528 = vmax.f32 %v1526, 0.0
  %v1529 = vadd.f32 %v1308, %v1527
  %v1530 = vadd.f32 %v1309, %v1528
  %v1531 = vmul.f32 %v1529, 0.5
  %v1532 = vmul.f32 %v1530, 0.5
  %v1533 = vpack.c.bf16 %v1532, %v1531
  %v1534 = vld [vmem:[%s5] sm:$0xf]
  %v1535 = vld [vmem:[%s5 + $0x4] sm:$0xf]
  %v1536 = vld [vmem:[%s5 + $0x8] sm:$0xf]
  %v1537 = vld [vmem:[%s5 + $0xc] sm:$0xf]
  %v1538 = vld [vmem:[%s5 + $0x10] sm:$0xf]
  %v1539 = vld [vmem:[%s5 + $0x14] sm:$0xf]
  %v1540 = vld [vmem:[%s5 + $0x18] sm:$0xf]
  %v1541 = vld [vmem:[%s5 + $0x1c] sm:$0xf]
  %v1542 = vld [vmem:[%s5 + $0x20] sm:$0xf]
  %v1543 = vld [vmem:[%s5 + $0x24] sm:$0xf]
  %v1544 = vld [vmem:[%s5 + $0x28] sm:$0xf]
  %v1545 = vld [vmem:[%s5 + $0x2c] sm:$0xf]
  %v1546 = vld [vmem:[%s5 + $0x30] sm:$0xf]
  %v1547 = vld [vmem:[%s5 + $0x34] sm:$0xf]
  %v1548 = vld [vmem:[%s5 + $0x38] sm:$0xf]
  %v1549 = vld [vmem:[%s5 + $0x3c] sm:$0xf]
  %v1550 = vld [vmem:[%s6] sm:$0x1]
  %v1552 = vlaneseq
  %v1553 = vshrl.u32 %v1552, 7
  %v1554 = vsub.s32 0, %v1553
  %v1555 = vrot.slane %v1550, %v1554
  %v1573 = vunpack.c.l.b16 %v1534
  %v1574 = vunpack.c.l.b16 %v1535
  %v1575 = vunpack.c.l.b16 %v1536
  %v1576 = vunpack.c.l.b16 %v1537
  %v1577 = vunpack.c.l.b16 %v1538
  %v1578 = vunpack.c.l.b16 %v1539
  %v1579 = vunpack.c.l.b16 %v1540
  %v1580 = vunpack.c.l.b16 %v1541
  %v1581 = vunpack.c.l.b16 %v1542
  %v1582 = vunpack.c.l.b16 %v1543
  %v1583 = vunpack.c.l.b16 %v1544
  %v1584 = vunpack.c.l.b16 %v1545
  %v1585 = vunpack.c.l.b16 %v1546
  %v1586 = vunpack.c.l.b16 %v1547
  %v1587 = vunpack.c.l.b16 %v1548
  %v1588 = vunpack.c.l.b16 %v1549
  %v1589 = vpack.c.b16 %v1574, %v1573
  %v1590 = vpack.c.b16 %v1576, %v1575
  %v1591 = vpack.c.b16 %v1578, %v1577
  %v1592 = vpack.c.b16 %v1580, %v1579
  %v1593 = vpack.c.b16 %v1582, %v1581
  %v1594 = vpack.c.b16 %v1584, %v1583
  %v1595 = vpack.c.b16 %v1586, %v1585
  %v1596 = vpack.c.b16 %v1588, %v1587
  %1605 = vmatprep.subr.bf16.mxu0 0
  %1606 = vmatpush1.bf16.msra.mxu0 %v1589
  %1607 = vmatprep.subr.bf16.mxu0 0
  %1608 = vmatpush1.bf16.msra.mxu0 %v1590
  %1609 = vmatprep.subr.bf16.mxu0 0
  %1610 = vmatpush1.bf16.msra.mxu0 %v1591
  %1611 = vmatprep.subr.bf16.mxu0 0
  %1612 = vmatpush1.bf16.msra.mxu0 %v1592
  %1613 = vmatprep.subr.bf16.mxu0 0
  %1614 = vmatpush1.bf16.msra.mxu0 %v1593
  %1615 = vmatprep.subr.bf16.mxu0 0
  %1616 = vmatpush1.bf16.msra.mxu0 %v1594
  %1617 = vmatprep.subr.bf16.mxu0 0
  %1618 = vmatpush1.bf16.msra.mxu0 %v1595
  %1619 = vmatprep.subr.bf16.mxu0 0
  %1620 = vmatpush1.bf16.msra.mxu0 %v1596
  %1621 = vmatprep.subr.bf16.mxu0 0
  %1622 = vmatpush1.bf16.msra.mxu0 0
  %1623 = vmatprep.subr.bf16.mxu0 0
  %1624 = vmatpush1.bf16.msra.mxu0 0
  %1625 = vmatprep.subr.bf16.mxu0 0
  %1626 = vmatpush1.bf16.msra.mxu0 0
  %1627 = vmatprep.subr.bf16.mxu0 0
  %1628 = vmatpush1.bf16.msra.mxu0 0
  %1629 = vmatprep.subr.bf16.mxu0 0
  %1630 = vmatpush1.bf16.msra.mxu0 0
  %1631 = vmatprep.subr.bf16.mxu0 0
  %1632 = vmatpush1.bf16.msra.mxu0 0
  %1633 = vmatprep.subr.bf16.mxu0 0
  %1634 = vmatpush1.bf16.msra.mxu0 0
  %1635 = vmatprep.subr.bf16.mxu0 0
  %1636 = vmatpush1.bf16.msra.mxu0 0
  %1637 = vmatprep.mubr.bf16.mxu0 0
  %1638 = vmatmul.mubr.bf16.gmra.mrb[0].mxu0 %v1533
  %v1639 = vpop.f32.mrb[0].mxu0
  %v1640 = vadd.f32 %v1555, %v1639
  %v1641 = vpop.f32.mrb[0].mxu0
  %v1642 = vpop.f32.mrb[0].mxu0
  %v1643 = vadd.f32 %v1555, %v1642
  %v1644 = vpop.f32.mrb[0].mxu0
  %1645 = vdwg.mxu0
  %v1646 = vmax.f32 %v1640, 0.0
  %v1647 = vmax.f32 %v1643, 0.0
  %v1648 = vpack.c.bf16 %v1647, %v1646
  %v1649 = vld [vmem:[%s7] sm:$0xf]
  %v1650 = vld [vmem:[%s7 + $0x4] sm:$0xf]
  %v1651 = vld [vmem:[%s7 + $0x8] sm:$0xf]
  %v1652 = vld [vmem:[%s7 + $0xc] sm:$0xf]
  %v1653 = vld [vmem:[%s7 + $0x10] sm:$0xf]
  %v1654 = vld [vmem:[%s7 + $0x14] sm:$0xf]
  %v1655 = vld [vmem:[%s7 + $0x18] sm:$0xf]
  %v1656 = vld [vmem:[%s7 + $0x1c] sm:$0xf]
  %v1657 = vld [vmem:[%s7 + $0x20] sm:$0xf]
  %v1658 = vld [vmem:[%s7 + $0x24] sm:$0xf]
  %v1659 = vld [vmem:[%s7 + $0x28] sm:$0xf]
  %v1660 = vld [vmem:[%s7 + $0x2c] sm:$0xf]
  %v1661 = vld [vmem:[%s7 + $0x30] sm:$0xf]
  %v1662 = vld [vmem:[%s7 + $0x34] sm:$0xf]
  %v1663 = vld [vmem:[%s7 + $0x38] sm:$0xf]
  %v1664 = vld [vmem:[%s7 + $0x3c] sm:$0xf]
  %v1665 = vld [vmem:[%s8] sm:$0x1]
  %v1667 = vlaneseq
  %v1668 = vshrl.u32 %v1667, 7
  %v1669 = vsub.s32 0, %v1668
  %v1670 = vrot.slane %v1665, %v1669
  %v1688 = vunpack.c.l.b16 %v1649
  %v1689 = vunpack.c.l.b16 %v1650
  %v1690 = vunpack.c.l.b16 %v1651
  %v1691 = vunpack.c.l.b16 %v1652
  %v1692 = vunpack.c.l.b16 %v1653
  %v1693 = vunpack.c.l.b16 %v1654
  %v1694 = vunpack.c.l.b16 %v1655
  %v1695 = vunpack.c.l.b16 %v1656
  %v1696 = vunpack.c.l.b16 %v1657
  %v1697 = vunpack.c.l.b16 %v1658
  %v1698 = vunpack.c.l.b16 %v1659
  %v1699 = vunpack.c.l.b16 %v1660
  %v1700 = vunpack.c.l.b16 %v1661
  %v1701 = vunpack.c.l.b16 %v1662
  %v1702 = vunpack.c.l.b16 %v1663
  %v1703 = vunpack.c.l.b16 %v1664
  %v1704 = vpack.c.b16 %v1689, %v1688
  %v1705 = vpack.c.b16 %v1691, %v1690
  %v1706 = vpack.c.b16 %v1693, %v1692
  %v1707 = vpack.c.b16 %v1695, %v1694
  %v1708 = vpack.c.b16 %v1697, %v1696
  %v1709 = vpack.c.b16 %v1699, %v1698
  %v1710 = vpack.c.b16 %v1701, %v1700
  %v1711 = vpack.c.b16 %v1703, %v1702
  %1720 = vmatprep.subr.bf16.mxu0 0
  %1721 = vmatpush1.bf16.msra.mxu0 %v1704
  %1722 = vmatprep.subr.bf16.mxu0 0
  %1723 = vmatpush1.bf16.msra.mxu0 %v1705
  %1724 = vmatprep.subr.bf16.mxu0 0
  %1725 = vmatpush1.bf16.msra.mxu0 %v1706
  %1726 = vmatprep.subr.bf16.mxu0 0
  %1727 = vmatpush1.bf16.msra.mxu0 %v1707
  %1728 = vmatprep.subr.bf16.mxu0 0
  %1729 = vmatpush1.bf16.msra.mxu0 %v1708
  %1730 = vmatprep.subr.bf16.mxu0 0
  %1731 = vmatpush1.bf16.msra.mxu0 %v1709
  %1732 = vmatprep.subr.bf16.mxu0 0
  %1733 = vmatpush1.bf16.msra.mxu0 %v1710
  %1734 = vmatprep.subr.bf16.mxu0 0
  %1735 = vmatpush1.bf16.msra.mxu0 %v1711
  %1736 = vmatprep.subr.bf16.mxu0 0
  %1737 = vmatpush1.bf16.msra.mxu0 0
  %1738 = vmatprep.subr.bf16.mxu0 0
  %1739 = vmatpush1.bf16.msra.mxu0 0
  %1740 = vmatprep.subr.bf16.mxu0 0
  %1741 = vmatpush1.bf16.msra.mxu0 0
  %1742 = vmatprep.subr.bf16.mxu0 0
  %1743 = vmatpush1.bf16.msra.mxu0 0
  %1744 = vmatprep.subr.bf16.mxu0 0
  %1745 = vmatpush1.bf16.msra.mxu0 0
  %1746 = vmatprep.subr.bf16.mxu0 0
  %1747 = vmatpush1.bf16.msra.mxu0 0
  %1748 = vmatprep.subr.bf16.mxu0 0
  %1749 = vmatpush1.bf16.msra.mxu0 0
  %1750 = vmatprep.subr.bf16.mxu0 0
  %1751 = vmatpush1.bf16.msra.mxu0 0
  %1752 = vmatprep.mubr.bf16.mxu0 0
  %1753 = vmatmul.mubr.bf16.gmra.mrb[0].mxu0 %v1648
  %v1754 = vpop.f32.mrb[0].mxu0
  %v1755 = vadd.f32 %v1670, %v1754
  %v1756 = vpop.f32.mrb[0].mxu0
  %v1757 = vpop.f32.mrb[0].mxu0
  %v1758 = vadd.f32 %v1670, %v1757
  %v1759 = vpop.f32.mrb[0].mxu0
  %1760 = vdwg.mxu0
  %1761 = vst [vmem:[%s9] sm:$0xff] %v1755
  %1762 = vst [vmem:[%s9 + $0x8] sm:$0xff] %v1758
  // Predicated region
  $region38: #{conv_backend_forward.1} parent=0 // pred_check
    _
  $region39: #{conv_backend_forward.1} parent=0 // pred_check_branch
    %1764 = sbr.rel (0) target = $region41
  $region40: #{conv_backend_forward.1} parent=0 // pred_region
    _
  $region41: #{conv_backend_forward.1} parent=0 // pred_fallthru
    _
  // Predicated region
  $region42: #{conv_backend_forward.1} parent=0 // pred_check
    _
  $region43: #{conv_backend_forward.1} parent=0 // pred_check_branch
    %1766 = sbr.rel (0) target = $region45
  $region44: #{conv_backend_forward.1} parent=0 // pred_region
    _
  $region45: #{conv_backend_forward.1} parent=0 // pred_fallthru
    _

</llo_original>
